<compile_context>
chip_gen: v5e
topology: v5e:2x2
jax: 0.10.0
libtpu: 0.0.40
codegen_flags: <defaults>
</compile_context>

<pallas_src>
import functools
import math

import jax
import jax.numpy as jnp
from jax.experimental import pallas as pl
from jax.experimental.pallas import tpu as pltpu

EPS = 1e-5  # nn.LayerNorm default


def _layernorm(x, w, b):
    mean = jnp.mean(x, axis=-1, keepdims=True)
    var = jnp.mean((x - mean) ** 2, axis=-1, keepdims=True)
    return (x - mean) * jax.lax.rsqrt(var + EPS) * w + b


def _gelu_exact(x):
    # F.gelu default = exact erf-based GELU
    return 0.5 * x * (1.0 + jax.lax.erf(x * (1.0 / math.sqrt(2.0))))


def encoder_kernel(q_ref, k_ref, v_ref, ln_ref, bias_ref, w_in_ref, wo_ref, w_out_ref,
                   latent_ref, *rest, num_heads, seq_len, need_weights):
    if need_weights:
        weights_ref, ctx_ref = rest
    else:
        (ctx_ref,) = rest
        weights_ref = None

    GL, E = q_ref.shape          # (G * L, E) slab: G batches, L tokens each
    L = seq_len
    G = GL // L
    H = num_heads
    Dh = E // H

    ln = ln_ref[...]     # (8, E) f32: lnq_w, lnq_b, lnk_w, lnk_b, lnv_w, lnv_b, lnp_w, lnp_b
    bias = bias_ref[...]  # (5, E) f32: bq, bk, bv, bo, b_out

    # ---- token-parallel pre-LayerNorms on the whole slab (f32 math) ----
    qn = _layernorm(q_ref[...], ln[0:1], ln[1:2])
    kn = _layernorm(k_ref[...], ln[2:3], ln[3:4])
    vn = _layernorm(v_ref[...], ln[4:5], ln[5:6])

    # ---- in-projections: bf16 MXU operands, f32 accumulation.
    #      1/sqrt(Dh) softmax scale is folded into w_in[0] / bias[0] at prep time.
    qp = jnp.dot(qn.astype(jnp.bfloat16), w_in_ref[0],
                 preferred_element_type=jnp.float32) + bias[0:1]
    kp = jnp.dot(kn.astype(jnp.bfloat16), w_in_ref[1],
                 preferred_element_type=jnp.float32) + bias[1:2]
    vp = jnp.dot(vn.astype(jnp.bfloat16), w_in_ref[2],
                 preferred_element_type=jnp.float32) + bias[2:3]

    qp16 = qp.astype(jnp.bfloat16)
    kp16 = kp.astype(jnp.bfloat16)
    vp16 = vp.astype(jnp.bfloat16)

    dn = (((1,), (1,)), ((), ()))  # contract last dims -> q @ k^T without transpose

    # ---- per-batch / per-head attention; contexts go straight into VMEM scratch ----
    # Static Python loops: G and H are small compile-time constants; each ctx_h is
    # stored immediately so live ranges stay bounded.
    for b in range(G):
        r0 = b * L
        w_sum = jnp.zeros((L, L), jnp.float32) if need_weights else None
        for h in range(H):
            c0 = h * Dh
            qh = qp16[r0:r0 + L, c0:c0 + Dh]
            kh = kp16[r0:r0 + L, c0:c0 + Dh]
            vh = vp16[r0:r0 + L, c0:c0 + Dh]
            s = jax.lax.dot_general(qh, kh, dn, preferred_element_type=jnp.float32)
            s = s - jnp.max(s, axis=-1, keepdims=True)
            p = jnp.exp(s)
            denom = jnp.sum(p, axis=-1, keepdims=True)
            if need_weights:
                p = p / denom                                 # exact: rows sum to 1
                w_sum = w_sum + p
            else:
                p = p * pl.reciprocal(denom, approx=True)     # EUP slot, ~free
            # TODO(synk): attention dropout (p=0.25) is train-mode only; eval semantics here.
            ctx_h = jnp.dot(p.astype(jnp.bfloat16), vh,
                            preferred_element_type=jnp.float32)          # (L, Dh)
            ctx_ref[r0:r0 + L, c0:c0 + Dh] = ctx_h            # lane-offset store into scratch
        if need_weights:
            # PyTorch default average_attn_weights=True -> mean over heads
            weights_ref[b] = (w_sum * (1.0 / H)).astype(weights_ref.dtype)

    # ---- ONE fat out-projection over the whole slab (K = E, not Dh) ----
    context = jnp.dot(ctx_ref[...].astype(jnp.bfloat16), wo_ref[...],
                      preferred_element_type=jnp.float32) + bias[3:4]

    # ---- post-norm, residual, Linear + GELU, residual (full slab, f32) ----
    context = _layernorm(context, ln[6:7], ln[7:8])
    latent = qn + context
    tmp = _gelu_exact(jnp.dot(latent.astype(jnp.bfloat16), w_out_ref[...],
                              preferred_element_type=jnp.float32) + bias[4:5])
    latent_ref[...] = (latent + tmp).astype(latent_ref.dtype)


def _default_batches_per_step(B, L, E):
    """Largest per-step batch count G that (a) divides B, (b) keeps the live f32
    working set comfortably inside v7x's 64 MiB VMEM, and (c) keeps n_steps >= 2
    when B >= 2 so the parallel grid axis can shard across v7x's two TensorCores
    and DMA/compute can overlap."""
    budget = 24 * 1024 * 1024
    per_batch = 14 * L * E * 4            # ~14 live f32 (L, E)-sized intermediates per batch
    g = max(1, min(B, budget // max(per_batch, 1)))
    if B >= 2:
        g = min(g, B // 2)
    while B % g:
        g -= 1
    return g


def _vmem_limit_bytes(G, L, E, n_steps, need_weights):
    """Explicit VMEM budget: lifts v5e's 16 MiB scoped default when needed and
    stays <= 48 MiB to leave headroom under v7x's 64 MiB physical VMEM."""
    f32 = 4
    slab = G * L * E * f32
    nbuf = 2 if n_steps > 1 else 1
    io = 4 * slab * nbuf                              # Q/K/V in + latent out (double-buffered)
    if need_weights:
        io += G * L * L * f32 * nbuf
    par = 13 * E * f32 + 5 * E * E * 2                # ln/bias (f32) + 5 bf16 weight matrices
    live = 12 * slab + slab                           # in-kernel f32 intermediates + ctx scratch
    est = 2 * (io + par + live)                       # 2x headroom for compiler temporaries
    return int(min(max(est, 16 * 1024 * 1024), 48 * 1024 * 1024))


def encoder_forward(Q, K, V, params, num_heads, *, need_weights=True,
                    batches_per_step=None):
    B, L, E = Q.shape
    assert E % num_heads == 0
    if batches_per_step is None:
        batches_per_step = _default_batches_per_step(B, L, E)
    assert B % batches_per_step == 0
    G = batches_per_step
    n_steps = B // G

    # Flatten tokens in the wrapper (free metadata reshape) so the kernel sees a
    # single (G*L, E) slab per grid step.
    Qf = Q.reshape(B * L, E)
    Kf = K.reshape(B * L, E)
    Vf = V.reshape(B * L, E)

    def seq_spec():
        return pl.BlockSpec((G * L, E), lambda i: (i, 0))

    def full_spec(arr):
        nd = arr.ndim
        return pl.BlockSpec(arr.shape, lambda i, _nd=nd: (0,) * _nd)

    # Packed parameters: 5 DMA'd arrays instead of 18.
    param_list = [params["ln"], params["bias"], params["w_in"],
                  params["wo"], params["w_out"]]

    kernel = functools.partial(encoder_kernel, num_heads=num_heads, seq_len=L,
                               need_weights=need_weights)

    out_shape = jax.ShapeDtypeStruct((B * L, E), jnp.float32)
    out_specs = seq_spec()
    if need_weights:
        out_shape = (out_shape, jax.ShapeDtypeStruct((B, L, L), jnp.float32))
        out_specs = (out_specs, pl.BlockSpec((G, L, L), lambda i: (i, 0, 0)))

    grid_spec = pltpu.PrefetchScalarGridSpec(
        num_scalar_prefetch=0,
        grid=(n_steps,),
        in_specs=[seq_spec(), seq_spec(), seq_spec()]
                 + [full_spec(p) for p in param_list],
        out_specs=out_specs,
        scratch_shapes=[pltpu.VMEM((G * L, E), jnp.float32)],   # per-step context scratch
    )

    outs = pl.pallas_call(
        kernel,
        out_shape=out_shape,
        grid_spec=grid_spec,
        compiler_params=pltpu.CompilerParams(
            dimension_semantics=("parallel",),
            vmem_limit_bytes=_vmem_limit_bytes(G, L, E, n_steps, need_weights)),
    )(Qf, Kf, Vf, *param_list)

    if need_weights:
        latent_flat, weights = outs
        return latent_flat.reshape(B, L, E), weights
    return outs.reshape(B, L, E)


def init_params(key, embed_dim, num_heads):
    E = embed_dim
    Dh = E // num_heads
    scale = 1.0 / math.sqrt(Dh)
    ks = jax.random.split(key, 6)
    # nn.MultiheadAttention in_proj_weight (3E, E) / bias (3E,), out_proj, nn.Linear
    in_proj_w = jax.random.normal(ks[0], (3 * E, E), jnp.float32) * 0.05
    in_proj_b = jax.random.normal(ks[1], (3 * E,), jnp.float32) * 0.05
    out_proj_w = jax.random.normal(ks[2], (E, E), jnp.float32) * 0.05
    out_proj_b = jax.random.normal(ks[3], (E,), jnp.float32) * 0.05
    lin_w = jax.random.normal(ks[4], (E, E), jnp.float32) * 0.05
    lin_b = jax.random.normal(ks[5], (E,), jnp.float32) * 0.05

    ones = jnp.ones((E,), jnp.float32)
    zeros = jnp.zeros((E,), jnp.float32)

    # LayerNorms (PyTorch default init): [lnq_w, lnq_b, lnk_w, lnk_b, lnv_w, lnv_b, lnp_w, lnp_b]
    ln = jnp.stack([ones, zeros, ones, zeros, ones, zeros, ones, zeros])

    # in-projection split + transposed so the kernel does x @ W;
    # softmax scale 1/sqrt(Dh) folded into the query projection + bias.
    wq = in_proj_w[0 * E:1 * E].T * scale
    wk = in_proj_w[1 * E:2 * E].T
    wv = in_proj_w[2 * E:3 * E].T
    bq = in_proj_b[0 * E:1 * E] * scale
    bk = in_proj_b[1 * E:2 * E]
    bv = in_proj_b[2 * E:3 * E]

    params = {
        "ln": ln,                                               # (8, E)    f32
        "bias": jnp.stack([bq, bk, bv, out_proj_b, lin_b]),     # (5, E)    f32
        "w_in": jnp.stack([wq, wk, wv]).astype(jnp.bfloat16),   # (3, E, E) bf16
        "wo": out_proj_w.T.astype(jnp.bfloat16),                # (E, E)    bf16
        "w_out": lin_w.T.astype(jnp.bfloat16),                  # (E, E)    bf16
    }
    return params


def encoder_reference(Q, K, V, params, num_heads):
    """Pure-JAX reference using the same packed (bf16-weight) parameters."""
    B, L, E = Q.shape
    H = num_heads
    Dh = E // H
    ln = params["ln"]
    bias = params["bias"]
    w_in = params["w_in"].astype(jnp.float32)
    wo = params["wo"].astype(jnp.float32)
    w_out = params["w_out"].astype(jnp.float32)

    qn = _layernorm(Q, ln[0], ln[1])
    kn = _layernorm(K, ln[2], ln[3])
    vn = _layernorm(V, ln[4], ln[5])
    qp = qn @ w_in[0] + bias[0]
    kp = kn @ w_in[1] + bias[1]
    vp = vn @ w_in[2] + bias[2]

    def split(x):  # (B, L, E) -> (B, H, L, Dh)
        return x.reshape(B, L, H, Dh).transpose(0, 2, 1, 3)

    s = jnp.einsum("bhqd,bhkd->bhqk", split(qp), split(kp))
    p = jax.nn.softmax(s, axis=-1)
    weights = jnp.mean(p, axis=1)
    ctx = jnp.einsum("bhqk,bhkd->bhqd", p, split(vp))
    ctx = ctx.transpose(0, 2, 1, 3).reshape(B, L, E)
    context = ctx @ wo + bias[3]
    context = _layernorm(context, ln[6], ln[7])
    latent = qn + context
    tmp = _gelu_exact(latent @ w_out + bias[4])
    return latent + tmp, weights


if __name__ == "__main__":
    B, L, E, H = 2, 8, 32, 4   # batch, seq, embed_dim, num_heads

    key = jax.random.PRNGKey(0)
    kq, kk, kv, kp = jax.random.split(key, 4)
    Q = jax.random.normal(kq, (B, L, E), jnp.float32)
    K = jax.random.normal(kk, (B, L, E), jnp.float32)
    V = jax.random.normal(kv, (B, L, E), jnp.float32)

    params = init_params(kp, E, H)

    # Module-matching path: returns (latent, averaged attention weights).
    latent, weights = encoder_forward(Q, K, V, params, H, need_weights=True)
    jax.block_until_ready((latent, weights))
    assert latent.shape == (B, L, E)
    assert weights.shape == (B, L, L)

    # Correctness vs a pure-JAX reference (loose tolerance: bf16 MXU operands).
    latent_ref, weights_ref = encoder_reference(Q, K, V, params, H)
    assert jnp.allclose(latent, latent_ref, atol=1e-1, rtol=1e-1), \
        float(jnp.max(jnp.abs(latent - latent_ref)))
    assert jnp.allclose(weights, weights_ref, atol=3e-2, rtol=3e-2), \
        float(jnp.max(jnp.abs(weights - weights_ref)))

    # Inference fast path (PyTorch need_weights=False analogue): no weights DMA,
    # approx-reciprocal softmax on the EUP.
    latent_only = encoder_forward(Q, K, V, params, H, need_weights=False)
    jax.block_until_ready(latent_only)
    assert latent_only.shape == (B, L, E)
    assert jnp.allclose(latent_only, latent_ref, atol=1e-1, rtol=1e-1)

    print("KERNEL_OK")
</pallas_src>

<mosaic_0001>
module attributes {stable_mosaic.version = 11 : i64} {
  func.func @encoder_kernel(%arg0: i32, %arg1: memref<8x32xf32, #tpu.memory_space<vmem>>, %arg2: memref<8x32xf32, #tpu.memory_space<vmem>>, %arg3: memref<8x32xf32, #tpu.memory_space<vmem>>, %arg4: memref<8x32xf32, #tpu.memory_space<vmem>>, %arg5: memref<5x32xf32, #tpu.memory_space<vmem>>, %arg6: memref<3x32x32xbf16, #tpu.memory_space<vmem>>, %arg7: memref<32x32xbf16, #tpu.memory_space<vmem>>, %arg8: memref<32x32xbf16, #tpu.memory_space<vmem>>, %arg9: memref<8x32xf32, #tpu.memory_space<vmem>>, %arg10: memref<1x8x8xf32, #tpu.memory_space<vmem>>, %arg11: memref<8x32xf32, #tpu.memory_space<vmem>>) attributes {dimension_semantics = [#tpu.dimension_semantics<parallel>], iteration_bounds = array<i64: 2>, scalar_prefetch = 0 : i64, scratch_operands = 1 : i64, tpu.core_type = #tpu.core_type<tc>, window_params = [{transform_indices = @transform_0, window_bounds = array<i64: 8, 32>}, {transform_indices = @transform_1, window_bounds = array<i64: 8, 32>}, {transform_indices = @transform_2, window_bounds = array<i64: 8, 32>}, {pipeline_mode = #tpu.pipeline_mode<synchronous>, transform_indices = @transform_3, window_bounds = array<i64: 8, 32>}, {pipeline_mode = #tpu.pipeline_mode<synchronous>, transform_indices = @transform_4, window_bounds = array<i64: 5, 32>}, {pipeline_mode = #tpu.pipeline_mode<synchronous>, transform_indices = @transform_5, window_bounds = array<i64: 3, 32, 32>}, {pipeline_mode = #tpu.pipeline_mode<synchronous>, transform_indices = @transform_6, window_bounds = array<i64: 32, 32>}, {pipeline_mode = #tpu.pipeline_mode<synchronous>, transform_indices = @transform_7, window_bounds = array<i64: 32, 32>}, {transform_indices = @transform_8, window_bounds = array<i64: 8, 32>}, {transform_indices = @transform_9, window_bounds = array<i64: 1, 8, 8>}]} {
    %c0 = arith.constant 0 : index
    %c0_0 = arith.constant 0 : index
    %0 = vector.load %arg4[%c0, %c0_0] : memref<8x32xf32, #tpu.memory_space<vmem>>, vector<8x32xf32>
    %c0_1 = arith.constant 0 : index
    %c0_2 = arith.constant 0 : index
    %1 = vector.load %arg5[%c0_1, %c0_2] : memref<5x32xf32, #tpu.memory_space<vmem>>, vector<5x32xf32>
    %c0_3 = arith.constant 0 : index
    %c0_4 = arith.constant 0 : index
    %2 = vector.load %arg1[%c0_3, %c0_4] : memref<8x32xf32, #tpu.memory_space<vmem>>, vector<8x32xf32>
    %3 = vector.extract_strided_slice %0 {offsets = [0, 0], sizes = [1, 32], strides = [1, 1]} : vector<8x32xf32> to vector<1x32xf32>
    %4 = vector.extract_strided_slice %0 {offsets = [1, 0], sizes = [1, 32], strides = [1, 1]} : vector<8x32xf32> to vector<1x32xf32>
    %cst = arith.constant dense<0.000000e+00> : vector<8xf32>
    %5 = vector.multi_reduction <add>, %2, %cst [1] : vector<8x32xf32> to vector<8xf32>
    %6 = vector.shape_cast %5 : vector<8xf32> to vector<8x1xf32>
    %cst_5 = arith.constant 3.200000e+01 : f32
    %7 = vector.broadcast %cst_5 : f32 to vector<8x1xf32>
    %8 = arith.divf %6, %7 : vector<8x1xf32>
    %9 = vector.broadcast %8 : vector<8x1xf32> to vector<8x32xf32>
    %10 = arith.subf %2, %9 : vector<8x32xf32>
    %11 = arith.mulf %10, %10 : vector<8x32xf32>
    %cst_6 = arith.constant dense<0.000000e+00> : vector<8xf32>
    %12 = vector.multi_reduction <add>, %11, %cst_6 [1] : vector<8x32xf32> to vector<8xf32>
    %13 = vector.shape_cast %12 : vector<8xf32> to vector<8x1xf32>
    %cst_7 = arith.constant 3.200000e+01 : f32
    %14 = vector.broadcast %cst_7 : f32 to vector<8x1xf32>
    %15 = arith.divf %13, %14 : vector<8x1xf32>
    %16 = vector.broadcast %8 : vector<8x1xf32> to vector<8x32xf32>
    %17 = arith.subf %2, %16 : vector<8x32xf32>
    %cst_8 = arith.constant 9.99999974E-6 : f32
    %18 = vector.broadcast %cst_8 : f32 to vector<8x1xf32>
    %19 = arith.addf %15, %18 : vector<8x1xf32>
    %20 = math.rsqrt %19 : vector<8x1xf32>
    %21 = vector.broadcast %20 : vector<8x1xf32> to vector<8x32xf32>
    %22 = arith.mulf %17, %21 : vector<8x32xf32>
    %23 = vector.broadcast %3 : vector<1x32xf32> to vector<8x32xf32>
    %24 = arith.mulf %22, %23 : vector<8x32xf32>
    %25 = vector.broadcast %4 : vector<1x32xf32> to vector<8x32xf32>
    %26 = arith.addf %24, %25 : vector<8x32xf32>
    %c0_9 = arith.constant 0 : index
    %c0_10 = arith.constant 0 : index
    %27 = vector.load %arg2[%c0_9, %c0_10] : memref<8x32xf32, #tpu.memory_space<vmem>>, vector<8x32xf32>
    %28 = vector.extract_strided_slice %0 {offsets = [2, 0], sizes = [1, 32], strides = [1, 1]} : vector<8x32xf32> to vector<1x32xf32>
    %29 = vector.extract_strided_slice %0 {offsets = [3, 0], sizes = [1, 32], strides = [1, 1]} : vector<8x32xf32> to vector<1x32xf32>
    %cst_11 = arith.constant dense<0.000000e+00> : vector<8xf32>
    %30 = vector.multi_reduction <add>, %27, %cst_11 [1] : vector<8x32xf32> to vector<8xf32>
    %31 = vector.shape_cast %30 : vector<8xf32> to vector<8x1xf32>
    %cst_12 = arith.constant 3.200000e+01 : f32
    %32 = vector.broadcast %cst_12 : f32 to vector<8x1xf32>
    %33 = arith.divf %31, %32 : vector<8x1xf32>
    %34 = vector.broadcast %33 : vector<8x1xf32> to vector<8x32xf32>
    %35 = arith.subf %27, %34 : vector<8x32xf32>
    %36 = arith.mulf %35, %35 : vector<8x32xf32>
    %cst_13 = arith.constant dense<0.000000e+00> : vector<8xf32>
    %37 = vector.multi_reduction <add>, %36, %cst_13 [1] : vector<8x32xf32> to vector<8xf32>
    %38 = vector.shape_cast %37 : vector<8xf32> to vector<8x1xf32>
    %cst_14 = arith.constant 3.200000e+01 : f32
    %39 = vector.broadcast %cst_14 : f32 to vector<8x1xf32>
    %40 = arith.divf %38, %39 : vector<8x1xf32>
    %41 = vector.broadcast %33 : vector<8x1xf32> to vector<8x32xf32>
    %42 = arith.subf %27, %41 : vector<8x32xf32>
    %cst_15 = arith.constant 9.99999974E-6 : f32
    %43 = vector.broadcast %cst_15 : f32 to vector<8x1xf32>
    %44 = arith.addf %40, %43 : vector<8x1xf32>
    %45 = math.rsqrt %44 : vector<8x1xf32>
    %46 = vector.broadcast %45 : vector<8x1xf32> to vector<8x32xf32>
    %47 = arith.mulf %42, %46 : vector<8x32xf32>
    %48 = vector.broadcast %28 : vector<1x32xf32> to vector<8x32xf32>
    %49 = arith.mulf %47, %48 : vector<8x32xf32>
    %50 = vector.broadcast %29 : vector<1x32xf32> to vector<8x32xf32>
    %51 = arith.addf %49, %50 : vector<8x32xf32>
    %c0_16 = arith.constant 0 : index
    %c0_17 = arith.constant 0 : index
    %52 = vector.load %arg3[%c0_16, %c0_17] : memref<8x32xf32, #tpu.memory_space<vmem>>, vector<8x32xf32>
    %53 = vector.extract_strided_slice %0 {offsets = [4, 0], sizes = [1, 32], strides = [1, 1]} : vector<8x32xf32> to vector<1x32xf32>
    %54 = vector.extract_strided_slice %0 {offsets = [5, 0], sizes = [1, 32], strides = [1, 1]} : vector<8x32xf32> to vector<1x32xf32>
    %cst_18 = arith.constant dense<0.000000e+00> : vector<8xf32>
    %55 = vector.multi_reduction <add>, %52, %cst_18 [1] : vector<8x32xf32> to vector<8xf32>
    %56 = vector.shape_cast %55 : vector<8xf32> to vector<8x1xf32>
    %cst_19 = arith.constant 3.200000e+01 : f32
    %57 = vector.broadcast %cst_19 : f32 to vector<8x1xf32>
    %58 = arith.divf %56, %57 : vector<8x1xf32>
    %59 = vector.broadcast %58 : vector<8x1xf32> to vector<8x32xf32>
    %60 = arith.subf %52, %59 : vector<8x32xf32>
    %61 = arith.mulf %60, %60 : vector<8x32xf32>
    %cst_20 = arith.constant dense<0.000000e+00> : vector<8xf32>
    %62 = vector.multi_reduction <add>, %61, %cst_20 [1] : vector<8x32xf32> to vector<8xf32>
    %63 = vector.shape_cast %62 : vector<8xf32> to vector<8x1xf32>
    %cst_21 = arith.constant 3.200000e+01 : f32
    %64 = vector.broadcast %cst_21 : f32 to vector<8x1xf32>
    %65 = arith.divf %63, %64 : vector<8x1xf32>
    %66 = vector.broadcast %58 : vector<8x1xf32> to vector<8x32xf32>
    %67 = arith.subf %52, %66 : vector<8x32xf32>
    %cst_22 = arith.constant 9.99999974E-6 : f32
    %68 = vector.broadcast %cst_22 : f32 to vector<8x1xf32>
    %69 = arith.addf %65, %68 : vector<8x1xf32>
    %70 = math.rsqrt %69 : vector<8x1xf32>
    %71 = vector.broadcast %70 : vector<8x1xf32> to vector<8x32xf32>
    %72 = arith.mulf %67, %71 : vector<8x32xf32>
    %73 = vector.broadcast %53 : vector<1x32xf32> to vector<8x32xf32>
    %74 = arith.mulf %72, %73 : vector<8x32xf32>
    %75 = vector.broadcast %54 : vector<1x32xf32> to vector<8x32xf32>
    %76 = arith.addf %74, %75 : vector<8x32xf32>
    %77 = arith.truncf %26 : vector<8x32xf32> to vector<8x32xbf16>
    %c0_23 = arith.constant 0 : index
    %c0_24 = arith.constant 0 : index
    %c0_25 = arith.constant 0 : index
    %78 = vector.load %arg6[%c0_23, %c0_24, %c0_25] : memref<3x32x32xbf16, #tpu.memory_space<vmem>>, vector<1x32x32xbf16>
    %79 = vector.shape_cast %78 : vector<1x32x32xbf16> to vector<32x32xbf16>
    %cst_26 = arith.constant dense<0.000000e+00> : vector<8x32xf32>
    %80 = tpu.matmul %77, %79, %cst_26 {dimension_numbers = #tpu.dot_dimension_numbers<[1], [0], [0], [1], [0, 0, 1, 1], [], []>} : vector<8x32xbf16>, vector<32x32xbf16>, vector<8x32xf32> -> vector<8x32xf32>
    %81 = vector.extract_strided_slice %1 {offsets = [0, 0], sizes = [1, 32], strides = [1, 1]} : vector<5x32xf32> to vector<1x32xf32>
    %82 = vector.broadcast %81 : vector<1x32xf32> to vector<8x32xf32>
    %83 = arith.addf %80, %82 : vector<8x32xf32>
    %84 = arith.truncf %51 : vector<8x32xf32> to vector<8x32xbf16>
    %c1 = arith.constant 1 : index
    %c0_27 = arith.constant 0 : index
    %c0_28 = arith.constant 0 : index
    %85 = vector.load %arg6[%c1, %c0_27, %c0_28] : memref<3x32x32xbf16, #tpu.memory_space<vmem>>, vector<1x32x32xbf16>
    %86 = vector.shape_cast %85 : vector<1x32x32xbf16> to vector<32x32xbf16>
    %cst_29 = arith.constant dense<0.000000e+00> : vector<8x32xf32>
    %87 = tpu.matmul %84, %86, %cst_29 {dimension_numbers = #tpu.dot_dimension_numbers<[1], [0], [0], [1], [0, 0, 1, 1], [], []>} : vector<8x32xbf16>, vector<32x32xbf16>, vector<8x32xf32> -> vector<8x32xf32>
    %88 = vector.extract_strided_slice %1 {offsets = [1, 0], sizes = [1, 32], strides = [1, 1]} : vector<5x32xf32> to vector<1x32xf32>
    %89 = vector.broadcast %88 : vector<1x32xf32> to vector<8x32xf32>
    %90 = arith.addf %87, %89 : vector<8x32xf32>
    %91 = arith.truncf %76 : vector<8x32xf32> to vector<8x32xbf16>
    %c2 = arith.constant 2 : index
    %c0_30 = arith.constant 0 : index
    %c0_31 = arith.constant 0 : index
    %92 = vector.load %arg6[%c2, %c0_30, %c0_31] : memref<3x32x32xbf16, #tpu.memory_space<vmem>>, vector<1x32x32xbf16>
    %93 = vector.shape_cast %92 : vector<1x32x32xbf16> to vector<32x32xbf16>
    %cst_32 = arith.constant dense<0.000000e+00> : vector<8x32xf32>
    %94 = tpu.matmul %91, %93, %cst_32 {dimension_numbers = #tpu.dot_dimension_numbers<[1], [0], [0], [1], [0, 0, 1, 1], [], []>} : vector<8x32xbf16>, vector<32x32xbf16>, vector<8x32xf32> -> vector<8x32xf32>
    %95 = vector.extract_strided_slice %1 {offsets = [2, 0], sizes = [1, 32], strides = [1, 1]} : vector<5x32xf32> to vector<1x32xf32>
    %96 = vector.broadcast %95 : vector<1x32xf32> to vector<8x32xf32>
    %97 = arith.addf %94, %96 : vector<8x32xf32>
    %98 = arith.truncf %83 : vector<8x32xf32> to vector<8x32xbf16>
    %99 = arith.truncf %90 : vector<8x32xf32> to vector<8x32xbf16>
    %100 = arith.truncf %97 : vector<8x32xf32> to vector<8x32xbf16>
    %cst_33 = arith.constant 0.000000e+00 : f32
    %101 = vector.broadcast %cst_33 : f32 to vector<8x8xf32>
    %102 = vector.extract_strided_slice %98 {offsets = [0, 0], sizes = [8, 8], strides = [1, 1]} : vector<8x32xbf16> to vector<8x8xbf16>
    %103 = vector.extract_strided_slice %99 {offsets = [0, 0], sizes = [8, 8], strides = [1, 1]} : vector<8x32xbf16> to vector<8x8xbf16>
    %104 = vector.extract_strided_slice %100 {offsets = [0, 0], sizes = [8, 8], strides = [1, 1]} : vector<8x32xbf16> to vector<8x8xbf16>
    %cst_34 = arith.constant dense<0.000000e+00> : vector<8x8xf32>
    %105 = tpu.matmul %102, %103, %cst_34 {dimension_numbers = #tpu.dot_dimension_numbers<[1], [1], [0], [0], [0, 0, 1, 0], [], []>} : vector<8x8xbf16>, vector<8x8xbf16>, vector<8x8xf32> -> vector<8x8xf32>
    %cst_35 = arith.constant dense<0xFF800000> : vector<8xf32>
    %106 = vector.multi_reduction <maximumf>, %105, %cst_35 [1] : vector<8x8xf32> to vector<8xf32>
    %107 = vector.shape_cast %106 : vector<8xf32> to vector<8x1xf32>
    %108 = vector.broadcast %107 : vector<8x1xf32> to vector<8x8xf32>
    %109 = arith.subf %105, %108 : vector<8x8xf32>
    %110 = math.exp %109 : vector<8x8xf32>
    %cst_36 = arith.constant dense<0.000000e+00> : vector<8xf32>
    %111 = vector.multi_reduction <add>, %110, %cst_36 [1] : vector<8x8xf32> to vector<8xf32>
    %112 = vector.shape_cast %111 : vector<8xf32> to vector<8x1xf32>
    %113 = vector.broadcast %112 : vector<8x1xf32> to vector<8x8xf32>
    %114 = arith.divf %110, %113 : vector<8x8xf32>
    %115 = arith.addf %101, %114 : vector<8x8xf32>
    %116 = arith.truncf %114 : vector<8x8xf32> to vector<8x8xbf16>
    %cst_37 = arith.constant dense<0.000000e+00> : vector<8x8xf32>
    %117 = tpu.matmul %116, %104, %cst_37 {dimension_numbers = #tpu.dot_dimension_numbers<[1], [0], [0], [1], [0, 0, 1, 1], [], []>} : vector<8x8xbf16>, vector<8x8xbf16>, vector<8x8xf32> -> vector<8x8xf32>
    %c0_38 = arith.constant 0 : index
    %c0_39 = arith.constant 0 : index
    %118 = vector.load %arg11[%c0_38, %c0_39] : memref<8x32xf32, #tpu.memory_space<vmem>>, vector<8x8xf32>
    tpu.vector_store %arg11[%c0_38, %c0_39], %117 {strides = array<i32>} : memref<8x32xf32, #tpu.memory_space<vmem>>, vector<8x8xf32>,
    %119 = vector.extract_strided_slice %98 {offsets = [0, 8], sizes = [8, 8], strides = [1, 1]} : vector<8x32xbf16> to vector<8x8xbf16>
    %120 = vector.extract_strided_slice %99 {offsets = [0, 8], sizes = [8, 8], strides = [1, 1]} : vector<8x32xbf16> to vector<8x8xbf16>
    %121 = vector.extract_strided_slice %100 {offsets = [0, 8], sizes = [8, 8], strides = [1, 1]} : vector<8x32xbf16> to vector<8x8xbf16>
    %cst_40 = arith.constant dense<0.000000e+00> : vector<8x8xf32>
    %122 = tpu.matmul %119, %120, %cst_40 {dimension_numbers = #tpu.dot_dimension_numbers<[1], [1], [0], [0], [0, 0, 1, 0], [], []>} : vector<8x8xbf16>, vector<8x8xbf16>, vector<8x8xf32> -> vector<8x8xf32>
    %cst_41 = arith.constant dense<0xFF800000> : vector<8xf32>
    %123 = vector.multi_reduction <maximumf>, %122, %cst_41 [1] : vector<8x8xf32> to vector<8xf32>
    %124 = vector.shape_cast %123 : vector<8xf32> to vector<8x1xf32>
    %125 = vector.broadcast %124 : vector<8x1xf32> to vector<8x8xf32>
    %126 = arith.subf %122, %125 : vector<8x8xf32>
    %127 = math.exp %126 : vector<8x8xf32>
    %cst_42 = arith.constant dense<0.000000e+00> : vector<8xf32>
    %128 = vector.multi_reduction <add>, %127, %cst_42 [1] : vector<8x8xf32> to vector<8xf32>
    %129 = vector.shape_cast %128 : vector<8xf32> to vector<8x1xf32>
    %130 = vector.broadcast %129 : vector<8x1xf32> to vector<8x8xf32>
    %131 = arith.divf %127, %130 : vector<8x8xf32>
    %132 = arith.addf %115, %131 : vector<8x8xf32>
    %133 = arith.truncf %131 : vector<8x8xf32> to vector<8x8xbf16>
    %cst_43 = arith.constant dense<0.000000e+00> : vector<8x8xf32>
    %134 = tpu.matmul %133, %121, %cst_43 {dimension_numbers = #tpu.dot_dimension_numbers<[1], [0], [0], [1], [0, 0, 1, 1], [], []>} : vector<8x8xbf16>, vector<8x8xbf16>, vector<8x8xf32> -> vector<8x8xf32>
    %c0_44 = arith.constant 0 : index
    %c8 = arith.constant 8 : index
    %135 = vector.load %arg11[%c0_44, %c8] : memref<8x32xf32, #tpu.memory_space<vmem>>, vector<8x8xf32>
    tpu.vector_store %arg11[%c0_44, %c8], %134 {strides = array<i32>} : memref<8x32xf32, #tpu.memory_space<vmem>>, vector<8x8xf32>,
    %136 = vector.extract_strided_slice %98 {offsets = [0, 16], sizes = [8, 8], strides = [1, 1]} : vector<8x32xbf16> to vector<8x8xbf16>
    %137 = vector.extract_strided_slice %99 {offsets = [0, 16], sizes = [8, 8], strides = [1, 1]} : vector<8x32xbf16> to vector<8x8xbf16>
    %138 = vector.extract_strided_slice %100 {offsets = [0, 16], sizes = [8, 8], strides = [1, 1]} : vector<8x32xbf16> to vector<8x8xbf16>
    %cst_45 = arith.constant dense<0.000000e+00> : vector<8x8xf32>
    %139 = tpu.matmul %136, %137, %cst_45 {dimension_numbers = #tpu.dot_dimension_numbers<[1], [1], [0], [0], [0, 0, 1, 0], [], []>} : vector<8x8xbf16>, vector<8x8xbf16>, vector<8x8xf32> -> vector<8x8xf32>
    %cst_46 = arith.constant dense<0xFF800000> : vector<8xf32>
    %140 = vector.multi_reduction <maximumf>, %139, %cst_46 [1] : vector<8x8xf32> to vector<8xf32>
    %141 = vector.shape_cast %140 : vector<8xf32> to vector<8x1xf32>
    %142 = vector.broadcast %141 : vector<8x1xf32> to vector<8x8xf32>
    %143 = arith.subf %139, %142 : vector<8x8xf32>
    %144 = math.exp %143 : vector<8x8xf32>
    %cst_47 = arith.constant dense<0.000000e+00> : vector<8xf32>
    %145 = vector.multi_reduction <add>, %144, %cst_47 [1] : vector<8x8xf32> to vector<8xf32>
    %146 = vector.shape_cast %145 : vector<8xf32> to vector<8x1xf32>
    %147 = vector.broadcast %146 : vector<8x1xf32> to vector<8x8xf32>
    %148 = arith.divf %144, %147 : vector<8x8xf32>
    %149 = arith.addf %132, %148 : vector<8x8xf32>
    %150 = arith.truncf %148 : vector<8x8xf32> to vector<8x8xbf16>
    %cst_48 = arith.constant dense<0.000000e+00> : vector<8x8xf32>
    %151 = tpu.matmul %150, %138, %cst_48 {dimension_numbers = #tpu.dot_dimension_numbers<[1], [0], [0], [1], [0, 0, 1, 1], [], []>} : vector<8x8xbf16>, vector<8x8xbf16>, vector<8x8xf32> -> vector<8x8xf32>
    %c0_49 = arith.constant 0 : index
    %c16 = arith.constant 16 : index
    %152 = vector.load %arg11[%c0_49, %c16] : memref<8x32xf32, #tpu.memory_space<vmem>>, vector<8x8xf32>
    tpu.vector_store %arg11[%c0_49, %c16], %151 {strides = array<i32>} : memref<8x32xf32, #tpu.memory_space<vmem>>, vector<8x8xf32>,
    %153 = vector.extract_strided_slice %98 {offsets = [0, 24], sizes = [8, 8], strides = [1, 1]} : vector<8x32xbf16> to vector<8x8xbf16>
    %154 = vector.extract_strided_slice %99 {offsets = [0, 24], sizes = [8, 8], strides = [1, 1]} : vector<8x32xbf16> to vector<8x8xbf16>
    %155 = vector.extract_strided_slice %100 {offsets = [0, 24], sizes = [8, 8], strides = [1, 1]} : vector<8x32xbf16> to vector<8x8xbf16>
    %cst_50 = arith.constant dense<0.000000e+00> : vector<8x8xf32>
    %156 = tpu.matmul %153, %154, %cst_50 {dimension_numbers = #tpu.dot_dimension_numbers<[1], [1], [0], [0], [0, 0, 1, 0], [], []>} : vector<8x8xbf16>, vector<8x8xbf16>, vector<8x8xf32> -> vector<8x8xf32>
    %cst_51 = arith.constant dense<0xFF800000> : vector<8xf32>
    %157 = vector.multi_reduction <maximumf>, %156, %cst_51 [1] : vector<8x8xf32> to vector<8xf32>
    %158 = vector.shape_cast %157 : vector<8xf32> to vector<8x1xf32>
    %159 = vector.broadcast %158 : vector<8x1xf32> to vector<8x8xf32>
    %160 = arith.subf %156, %159 : vector<8x8xf32>
    %161 = math.exp %160 : vector<8x8xf32>
    %cst_52 = arith.constant dense<0.000000e+00> : vector<8xf32>
    %162 = vector.multi_reduction <add>, %161, %cst_52 [1] : vector<8x8xf32> to vector<8xf32>
    %163 = vector.shape_cast %162 : vector<8xf32> to vector<8x1xf32>
    %164 = vector.broadcast %163 : vector<8x1xf32> to vector<8x8xf32>
    %165 = arith.divf %161, %164 : vector<8x8xf32>
    %166 = arith.addf %149, %165 : vector<8x8xf32>
    %167 = arith.truncf %165 : vector<8x8xf32> to vector<8x8xbf16>
    %cst_53 = arith.constant dense<0.000000e+00> : vector<8x8xf32>
    %168 = tpu.matmul %167, %155, %cst_53 {dimension_numbers = #tpu.dot_dimension_numbers<[1], [0], [0], [1], [0, 0, 1, 1], [], []>} : vector<8x8xbf16>, vector<8x8xbf16>, vector<8x8xf32> -> vector<8x8xf32>
    %c0_54 = arith.constant 0 : index
    %c24 = arith.constant 24 : index
    %169 = vector.load %arg11[%c0_54, %c24] : memref<8x32xf32, #tpu.memory_space<vmem>>, vector<8x8xf32>
    tpu.vector_store %arg11[%c0_54, %c24], %168 {strides = array<i32>} : memref<8x32xf32, #tpu.memory_space<vmem>>, vector<8x8xf32>,
    %cst_55 = arith.constant 2.500000e-01 : f32
    %170 = vector.broadcast %cst_55 : f32 to vector<8x8xf32>
    %171 = arith.mulf %166, %170 : vector<8x8xf32>
    %c0_56 = arith.constant 0 : index
    %c0_57 = arith.constant 0 : index
    %c0_58 = arith.constant 0 : index
    %172 = vector.load %arg10[%c0_56, %c0_57, %c0_58] : memref<1x8x8xf32, #tpu.memory_space<vmem>>, vector<1x8x8xf32>
    %173 = vector.shape_cast %172 : vector<1x8x8xf32> to vector<8x8xf32>
    %174 = vector.shape_cast %171 : vector<8x8xf32> to vector<1x8x8xf32>
    tpu.vector_store %arg10[%c0_56, %c0_57, %c0_58], %174 {strides = array<i32>} : memref<1x8x8xf32, #tpu.memory_space<vmem>>, vector<1x8x8xf32>,
    %c0_59 = arith.constant 0 : index
    %c0_60 = arith.constant 0 : index
    %175 = vector.load %arg11[%c0_59, %c0_60] : memref<8x32xf32, #tpu.memory_space<vmem>>, vector<8x32xf32>
    %176 = arith.truncf %175 : vector<8x32xf32> to vector<8x32xbf16>
    %c0_61 = arith.constant 0 : index
    %c0_62 = arith.constant 0 : index
    %177 = vector.load %arg7[%c0_61, %c0_62] : memref<32x32xbf16, #tpu.memory_space<vmem>>, vector<32x32xbf16>
    %cst_63 = arith.constant dense<0.000000e+00> : vector<8x32xf32>
    %178 = tpu.matmul %176, %177, %cst_63 {dimension_numbers = #tpu.dot_dimension_numbers<[1], [0], [0], [1], [0, 0, 1, 1], [], []>} : vector<8x32xbf16>, vector<32x32xbf16>, vector<8x32xf32> -> vector<8x32xf32>
    %179 = vector.extract_strided_slice %1 {offsets = [3, 0], sizes = [1, 32], strides = [1, 1]} : vector<5x32xf32> to vector<1x32xf32>
    %180 = vector.broadcast %179 : vector<1x32xf32> to vector<8x32xf32>
    %181 = arith.addf %178, %180 : vector<8x32xf32>
    %182 = vector.extract_strided_slice %0 {offsets = [6, 0], sizes = [1, 32], strides = [1, 1]} : vector<8x32xf32> to vector<1x32xf32>
    %183 = vector.extract_strided_slice %0 {offsets = [7, 0], sizes = [1, 32], strides = [1, 1]} : vector<8x32xf32> to vector<1x32xf32>
    %cst_64 = arith.constant dense<0.000000e+00> : vector<8xf32>
    %184 = vector.multi_reduction <add>, %181, %cst_64 [1] : vector<8x32xf32> to vector<8xf32>
    %185 = vector.shape_cast %184 : vector<8xf32> to vector<8x1xf32>
    %cst_65 = arith.constant 3.200000e+01 : f32
    %186 = vector.broadcast %cst_65 : f32 to vector<8x1xf32>
    %187 = arith.divf %185, %186 : vector<8x1xf32>
    %188 = vector.broadcast %187 : vector<8x1xf32> to vector<8x32xf32>
    %189 = arith.subf %181, %188 : vector<8x32xf32>
    %190 = arith.mulf %189, %189 : vector<8x32xf32>
    %cst_66 = arith.constant dense<0.000000e+00> : vector<8xf32>
    %191 = vector.multi_reduction <add>, %190, %cst_66 [1] : vector<8x32xf32> to vector<8xf32>
    %192 = vector.shape_cast %191 : vector<8xf32> to vector<8x1xf32>
    %cst_67 = arith.constant 3.200000e+01 : f32
    %193 = vector.broadcast %cst_67 : f32 to vector<8x1xf32>
    %194 = arith.divf %192, %193 : vector<8x1xf32>
    %195 = vector.broadcast %187 : vector<8x1xf32> to vector<8x32xf32>
    %196 = arith.subf %181, %195 : vector<8x32xf32>
    %cst_68 = arith.constant 9.99999974E-6 : f32
    %197 = vector.broadcast %cst_68 : f32 to vector<8x1xf32>
    %198 = arith.addf %194, %197 : vector<8x1xf32>
    %199 = math.rsqrt %198 : vector<8x1xf32>
    %200 = vector.broadcast %199 : vector<8x1xf32> to vector<8x32xf32>
    %201 = arith.mulf %196, %200 : vector<8x32xf32>
    %202 = vector.broadcast %182 : vector<1x32xf32> to vector<8x32xf32>
    %203 = arith.mulf %201, %202 : vector<8x32xf32>
    %204 = vector.broadcast %183 : vector<1x32xf32> to vector<8x32xf32>
    %205 = arith.addf %203, %204 : vector<8x32xf32>
    %206 = arith.addf %26, %205 : vector<8x32xf32>
    %207 = arith.truncf %206 : vector<8x32xf32> to vector<8x32xbf16>
    %c0_69 = arith.constant 0 : index
    %c0_70 = arith.constant 0 : index
    %208 = vector.load %arg8[%c0_69, %c0_70] : memref<32x32xbf16, #tpu.memory_space<vmem>>, vector<32x32xbf16>
    %cst_71 = arith.constant dense<0.000000e+00> : vector<8x32xf32>
    %209 = tpu.matmul %207, %208, %cst_71 {dimension_numbers = #tpu.dot_dimension_numbers<[1], [0], [0], [1], [0, 0, 1, 1], [], []>} : vector<8x32xbf16>, vector<32x32xbf16>, vector<8x32xf32> -> vector<8x32xf32>
    %210 = vector.extract_strided_slice %1 {offsets = [4, 0], sizes = [1, 32], strides = [1, 1]} : vector<5x32xf32> to vector<1x32xf32>
    %211 = vector.broadcast %210 : vector<1x32xf32> to vector<8x32xf32>
    %212 = arith.addf %209, %211 : vector<8x32xf32>
    %cst_72 = arith.constant 5.000000e-01 : f32
    %213 = vector.broadcast %cst_72 : f32 to vector<8x32xf32>
    %214 = arith.mulf %213, %212 : vector<8x32xf32>
    %cst_73 = arith.constant 0.707106769 : f32
    %215 = vector.broadcast %cst_73 : f32 to vector<8x32xf32>
    %216 = arith.mulf %212, %215 : vector<8x32xf32>
    %217 = math.erf %216 : vector<8x32xf32>
    %cst_74 = arith.constant 1.000000e+00 : f32
    %218 = vector.broadcast %cst_74 : f32 to vector<8x32xf32>
    %219 = arith.addf %218, %217 : vector<8x32xf32>
    %220 = arith.mulf %214, %219 : vector<8x32xf32>
    %221 = arith.addf %206, %220 : vector<8x32xf32>
    %c0_75 = arith.constant 0 : index
    %c0_76 = arith.constant 0 : index
    %222 = vector.load %arg9[%c0_75, %c0_76] : memref<8x32xf32, #tpu.memory_space<vmem>>, vector<8x32xf32>
    tpu.vector_store %arg9[%c0_75, %c0_76], %221 {strides = array<i32>} : memref<8x32xf32, #tpu.memory_space<vmem>>, vector<8x32xf32>,
    return
  }
  func.func @transform_0(%arg0: i32) -> (i32, i32) {
    %c0_i32 = arith.constant 0 : i32
    %c0_i32_0 = arith.constant 0 : i32
    return %arg0, %c0_i32 : i32, i32
  }
  func.func @transform_1(%arg0: i32) -> (i32, i32) {
    %c0_i32 = arith.constant 0 : i32
    %c0_i32_0 = arith.constant 0 : i32
    return %arg0, %c0_i32 : i32, i32
  }
  func.func @transform_2(%arg0: i32) -> (i32, i32) {
    %c0_i32 = arith.constant 0 : i32
    %c0_i32_0 = arith.constant 0 : i32
    return %arg0, %c0_i32 : i32, i32
  }
  func.func @transform_3(%arg0: i32) -> (i32, i32) {
    %c0_i32 = arith.constant 0 : i32
    %c0_i32_0 = arith.constant 0 : i32
    %c0_i32_1 = arith.constant 0 : i32
    return %c0_i32, %c0_i32_0 : i32, i32
  }
  func.func @transform_4(%arg0: i32) -> (i32, i32) {
    %c0_i32 = arith.constant 0 : i32
    %c0_i32_0 = arith.constant 0 : i32
    %c0_i32_1 = arith.constant 0 : i32
    return %c0_i32, %c0_i32_0 : i32, i32
  }
  func.func @transform_5(%arg0: i32) -> (i32, i32, i32) {
    %c0_i32 = arith.constant 0 : i32
    %c0_i32_0 = arith.constant 0 : i32
    %c0_i32_1 = arith.constant 0 : i32
    %c0_i32_2 = arith.constant 0 : i32
    return %c0_i32, %c0_i32_0, %c0_i32_1 : i32, i32, i32
  }
  func.func @transform_6(%arg0: i32) -> (i32, i32) {
    %c0_i32 = arith.constant 0 : i32
    %c0_i32_0 = arith.constant 0 : i32
    %c0_i32_1 = arith.constant 0 : i32
    return %c0_i32, %c0_i32_0 : i32, i32
  }
  func.func @transform_7(%arg0: i32) -> (i32, i32) {
    %c0_i32 = arith.constant 0 : i32
    %c0_i32_0 = arith.constant 0 : i32
    %c0_i32_1 = arith.constant 0 : i32
    return %c0_i32, %c0_i32_0 : i32, i32
  }
  func.func @transform_8(%arg0: i32) -> (i32, i32) {
    %c0_i32 = arith.constant 0 : i32
    %c0_i32_0 = arith.constant 0 : i32
    return %arg0, %c0_i32 : i32, i32
  }
  func.func @transform_9(%arg0: i32) -> (i32, i32, i32) {
    %c0_i32 = arith.constant 0 : i32
    %c0_i32_0 = arith.constant 0 : i32
    %c0_i32_1 = arith.constant 0 : i32
    return %arg0, %c0_i32, %c0_i32_0 : i32, i32, i32
  }
}

</mosaic_0001>

<llo_original>
// kernel: tpu_custom_call.1
$region0: #{tpu_custom_call.1}
  #allocation0 [shape = 'u32[]', space=smem, size = 0x4, offset = 0x4, fixed_abs, tag = 'smem constant byte address 0x4 - core index']
  #allocation1 [shape = 'u32[72,128]{1,0:T(1,128)}', space=vmem, size = 0x9000, scoped, tag = 'internal scratch']
  #allocation2 [shape = 'f32[8,32]{1,0:T(8,128)}', space=vmem, size = 0x1000, scoped, tag = 'scratch operand']
  %s0 = inlined_call_operand.hbm [shape: f32[16,32], index: 0, kind: input, shape index: {}]
  %s1 = inlined_call_operand.hbm [shape: f32[16,32], index: 1, kind: input, shape index: {}]
  %s2 = inlined_call_operand.hbm [shape: f32[16,32], index: 2, kind: input, shape index: {}]
  %s3 = inlined_call_operand.hbm [shape: f32[8,32], index: 3, kind: input, shape index: {}]
  %s4 = inlined_call_operand.hbm [shape: f32[5,32], index: 4, kind: input, shape index: {}]
  %s5 = inlined_call_operand.hbm [shape: bf16[3,32,32], index: 5, kind: input, shape index: {}]
  %s6 = inlined_call_operand.hbm [shape: bf16[32,32], index: 6, kind: input, shape index: {}]
  %s7 = inlined_call_operand.hbm [shape: bf16[32,32], index: 7, kind: input, shape index: {}]
  %s8 = inlined_call_operand.hbm [shape: f32[16,32], index: 8, kind: output, shape index: {0}]
  %s9 = inlined_call_operand.hbm [shape: f32[2,8,8], index: 9, kind: output, shape index: {1}]
  %10 = xla_tuple %s8, %s9
  %s11 = sld [smem:[#allocation0]]
  $region105: #{tpu_custom_call.1} parent=0
    _
  %s13 = ssub.s32 1, %s11
  %s14 = scalar_select 0, %s13, %s11
  $region1: #{tpu_custom_call.1} parent=0
    #allocation3 [shape = 'u8[8192]{0}', space=vmem, size = 0x2000, scoped, tag = 'input window, operand 0']
    #allocation4 [shape = 's32[2]{0}', space=sflag, size = 0x8, scoped, tag = 'scoped memory for tpu_custom_call.1']
    #allocation5 [shape = 's32[2]{0}', space=sflag, size = 0x8, scoped, tag = 'scoped memory for tpu_custom_call.1']
    #allocation6 [shape = 'u8[8192]{0}', space=vmem, size = 0x2000, scoped, tag = 'input window, operand 1']
    #allocation7 [shape = 's32[2]{0}', space=sflag, size = 0x8, scoped, tag = 'scoped memory for tpu_custom_call.1']
    #allocation8 [shape = 'u8[8192]{0}', space=vmem, size = 0x2000, scoped, tag = 'input window, operand 2']
    #allocation9 [shape = 'u8[4096]{0}', space=vmem, size = 0x1000, scoped, tag = 'input window, operand 3, single buffered']
    #allocation10 [shape = 's32[1]{0}', space=sflag, size = 0x4, scoped, tag = 'scoped memory for tpu_custom_call.1']
    #allocation11 [shape = 'u8[4096]{0}', space=vmem, size = 0x1000, scoped, tag = 'input window, operand 4, single buffered']
    #allocation12 [shape = 'u8[24576]{0}', space=vmem, size = 0x6000, scoped, tag = 'input window, operand 5, single buffered']
    #allocation13 [shape = 's32[1]{0}', space=sflag, size = 0x4, scoped, tag = 'scoped memory for tpu_custom_call.1']
    #allocation14 [shape = 'u8[8192]{0}', space=vmem, size = 0x2000, scoped, tag = 'input window, operand 6, single buffered']
    #allocation15 [shape = 'u8[8192]{0}', space=vmem, size = 0x2000, scoped, tag = 'input window, operand 7, single buffered']
    #allocation16 [shape = 's32[1]{0}', space=sflag, size = 0x4, scoped, tag = 'scoped memory for tpu_custom_call.1']
    #allocation17 [shape = 'u8[8192]{0}', space=vmem, size = 0x2000, scoped, tag = 'output window, operand 0']
    #allocation18 [shape = 'u8[8192]{0}', space=vmem, size = 0x2000, scoped, tag = 'output window, operand 1']
    #allocation19 [shape = 's32[2]{0}', space=sflag, size = 0x8, scoped, tag = 'scoped memory for tpu_custom_call.1']
    %15 = vsyncpa [#allocation4], 0
    %s16 = scalar_lea.sflag [#allocation4], 1
    %17 = vsyncpa %s16, 0
    %18 = vsyncpa [#allocation7], 0
    %s19 = scalar_lea.sflag [#allocation7], 1
    %20 = vsyncpa %s19, 0
    %21 = vsyncpa [#allocation10], 0
    %22 = vsyncpa [#allocation13], 0
    %23 = vsyncpa [#allocation16], 0
    %24 = vsyncpa [#allocation5], 0
    %s25 = scalar_lea.sflag [#allocation5], 1
    %26 = vsyncpa %s25, 0
    %27 = vsyncpa [#allocation19], 0
    %s28 = scalar_lea.sflag [#allocation19], 1
    %29 = vsyncpa %s28, 0
    loop: start=0, step=1, limit=4
    $region2: #{tpu_custom_call.1} parent=1 // loop_pre_header
      _
    $region3: #{tpu_custom_call.1} parent=1 // loop_header
      %s31 = sphi 0, %s35
      %p32 = scmp.ge.s32.totalorder %s31, 4
      %s41 = sphi 0, %s43
      %s44 = sphi 0, %s41
      %s45 = sphi 0, %s44
      %s61 = sphi 0, %s45
      %s67 = sphi 0, %s69
      %s70 = sphi 0, %s67
      %s71 = sphi 0, %s70
      %s87 = sphi 0, %s71
      %s93 = sphi 0, %s95
      %s96 = sphi 0, %s93
      %s97 = sphi 0, %s96
      %s113 = sphi 0, %s97
      %s117 = sphi 0, %s117
      %s119 = sphi 0, %s117
      %s120 = sphi 0, %s119
      %s134 = sphi 0, %s120
      %s138 = sphi 0, %s138
      %s140 = sphi 0, %s138
      %s141 = sphi 0, %s140
      %s155 = sphi 0, %s141
      %s159 = sphi 0, %s159
      %s161 = sphi 0, %s159
      %s162 = sphi 0, %s161
      %s176 = sphi 0, %s162
      %s180 = sphi 0, %s180
      %s182 = sphi 0, %s180
      %s183 = sphi 0, %s182
      %s197 = sphi 0, %s183
      %s201 = sphi 0, %s201
      %s203 = sphi 0, %s201
      %s204 = sphi 0, %s203
      %s218 = sphi 0, %s204
      %s224 = sphi 0, %s226
      %s227 = sphi 0, %s224
      %s228 = sphi 0, %s227
      %s244 = sphi 0, %s228
      %s250 = sphi 0, %s252
      %s253 = sphi 0, %s250
      %s254 = sphi 0, %s253
      %s270 = sphi 0, %s254
    $region4: #{tpu_custom_call.1} parent=1 // loop_header_branch
      %34 = sbr.rel (%p32) target = $region8
    $region5: #{tpu_custom_call.1} parent=1 // loop_body
      %s36 = ssub.s32 %s31, 1
      %s37 = ssub.s32 %s31, 2
      %s38 = sadd.s32 %s31, 1
      %s39 = ssub.s32 %s31, %s38
      %p40 = scmp.eq.s32.totalorder %s39, 0
      %s42 = sadd.s32 %s41, 1
      %s43 = scalar_select %p40, %s41, %s42
      %p46 = pneg %p40
      %p47 = scmp.eq.s32.totalorder %s31, 1
      %p48 = por %p46, %p47
      %p49 = scmp.ne.s32.totalorder %s41, %s44
      %p50 = scmp.eq.s32.totalorder %s31, 0
      %p51 = por %p49, %p50
      %p52 = scmp.ne.s32.totalorder %s41, %s44
      %p53 = scmp.eq.s32.totalorder %s36, 1
      %p54 = por %p52, %p53
      %p55 = scmp.ne.s32.totalorder %s44, %s45
      %p56 = scmp.eq.s32.totalorder %s36, 0
      %p57 = por %p55, %p56
      %p58 = scmp.ne.s32.totalorder %s44, %s45
      %p59 = scmp.eq.s32.totalorder %s37, 1
      %p60 = por %p58, %p59
      %p62 = scmp.ne.s32.totalorder %s45, %s61
      %p63 = scmp.eq.s32.totalorder %s37, 0
      %p64 = por %p62, %p63
      %s65 = ssub.s32 %s31, %s38
      %p66 = scmp.eq.s32.totalorder %s65, 0
      %s68 = sadd.s32 %s67, 1
      %s69 = scalar_select %p66, %s67, %s68
      %p72 = pneg %p66
      %p73 = scmp.eq.s32.totalorder %s31, 1
      %p74 = por %p72, %p73
      %p75 = scmp.ne.s32.totalorder %s67, %s70
      %p76 = scmp.eq.s32.totalorder %s31, 0
      %p77 = por %p75, %p76
      %p78 = scmp.ne.s32.totalorder %s67, %s70
      %p79 = scmp.eq.s32.totalorder %s36, 1
      %p80 = por %p78, %p79
      %p81 = scmp.ne.s32.totalorder %s70, %s71
      %p82 = scmp.eq.s32.totalorder %s36, 0
      %p83 = por %p81, %p82
      %p84 = scmp.ne.s32.totalorder %s70, %s71
      %p85 = scmp.eq.s32.totalorder %s37, 1
      %p86 = por %p84, %p85
      %p88 = scmp.ne.s32.totalorder %s71, %s87
      %p89 = scmp.eq.s32.totalorder %s37, 0
      %p90 = por %p88, %p89
      %s91 = ssub.s32 %s31, %s38
      %p92 = scmp.eq.s32.totalorder %s91, 0
      %s94 = sadd.s32 %s93, 1
      %s95 = scalar_select %p92, %s93, %s94
      %p98 = pneg %p92
      %p99 = scmp.eq.s32.totalorder %s31, 1
      %p100 = por %p98, %p99
      %p101 = scmp.ne.s32.totalorder %s93, %s96
      %p102 = scmp.eq.s32.totalorder %s31, 0
      %p103 = por %p101, %p102
      %p104 = scmp.ne.s32.totalorder %s93, %s96
      %p105 = scmp.eq.s32.totalorder %s36, 1
      %p106 = por %p104, %p105
      %p107 = scmp.ne.s32.totalorder %s96, %s97
      %p108 = scmp.eq.s32.totalorder %s36, 0
      %p109 = por %p107, %p108
      %p110 = scmp.ne.s32.totalorder %s96, %s97
      %p111 = scmp.eq.s32.totalorder %s37, 1
      %p112 = por %p110, %p111
      %p114 = scmp.ne.s32.totalorder %s97, %s113
      %p115 = scmp.eq.s32.totalorder %s37, 0
      %p116 = por %p114, %p115
      %s118 = sadd.s32 %s117, 1
      %p121 = scmp.eq.s32.totalorder %s31, 1
      %p122 = scmp.ne.s32.totalorder %s117, %s119
      %p123 = scmp.eq.s32.totalorder %s31, 0
      %p124 = por %p122, %p123
      %p125 = scmp.ne.s32.totalorder %s117, %s119
      %p126 = scmp.eq.s32.totalorder %s36, 1
      %p127 = por %p125, %p126
      %p128 = scmp.ne.s32.totalorder %s119, %s120
      %p129 = scmp.eq.s32.totalorder %s36, 0
      %p130 = por %p128, %p129
      %p131 = scmp.ne.s32.totalorder %s119, %s120
      %p132 = scmp.eq.s32.totalorder %s37, 1
      %p133 = por %p131, %p132
      %p135 = scmp.ne.s32.totalorder %s120, %s134
      %p136 = scmp.eq.s32.totalorder %s37, 0
      %p137 = por %p135, %p136
      %s139 = sadd.s32 %s138, 1
      %p142 = scmp.eq.s32.totalorder %s31, 1
      %p143 = scmp.ne.s32.totalorder %s138, %s140
      %p144 = scmp.eq.s32.totalorder %s31, 0
      %p145 = por %p143, %p144
      %p146 = scmp.ne.s32.totalorder %s138, %s140
      %p147 = scmp.eq.s32.totalorder %s36, 1
      %p148 = por %p146, %p147
      %p149 = scmp.ne.s32.totalorder %s140, %s141
      %p150 = scmp.eq.s32.totalorder %s36, 0
      %p151 = por %p149, %p150
      %p152 = scmp.ne.s32.totalorder %s140, %s141
      %p153 = scmp.eq.s32.totalorder %s37, 1
      %p154 = por %p152, %p153
      %p156 = scmp.ne.s32.totalorder %s141, %s155
      %p157 = scmp.eq.s32.totalorder %s37, 0
      %p158 = por %p156, %p157
      %s160 = sadd.s32 %s159, 1
      %p163 = scmp.eq.s32.totalorder %s31, 1
      %p164 = scmp.ne.s32.totalorder %s159, %s161
      %p165 = scmp.eq.s32.totalorder %s31, 0
      %p166 = por %p164, %p165
      %p167 = scmp.ne.s32.totalorder %s159, %s161
      %p168 = scmp.eq.s32.totalorder %s36, 1
      %p169 = por %p167, %p168
      %p170 = scmp.ne.s32.totalorder %s161, %s162
      %p171 = scmp.eq.s32.totalorder %s36, 0
      %p172 = por %p170, %p171
      %p173 = scmp.ne.s32.totalorder %s161, %s162
      %p174 = scmp.eq.s32.totalorder %s37, 1
      %p175 = por %p173, %p174
      %p177 = scmp.ne.s32.totalorder %s162, %s176
      %p178 = scmp.eq.s32.totalorder %s37, 0
      %p179 = por %p177, %p178
      %s181 = sadd.s32 %s180, 1
      %p184 = scmp.eq.s32.totalorder %s31, 1
      %p185 = scmp.ne.s32.totalorder %s180, %s182
      %p186 = scmp.eq.s32.totalorder %s31, 0
      %p187 = por %p185, %p186
      %p188 = scmp.ne.s32.totalorder %s180, %s182
      %p189 = scmp.eq.s32.totalorder %s36, 1
      %p190 = por %p188, %p189
      %p191 = scmp.ne.s32.totalorder %s182, %s183
      %p192 = scmp.eq.s32.totalorder %s36, 0
      %p193 = por %p191, %p192
      %p194 = scmp.ne.s32.totalorder %s182, %s183
      %p195 = scmp.eq.s32.totalorder %s37, 1
      %p196 = por %p194, %p195
      %p198 = scmp.ne.s32.totalorder %s183, %s197
      %p199 = scmp.eq.s32.totalorder %s37, 0
      %p200 = por %p198, %p199
      %s202 = sadd.s32 %s201, 1
      %p205 = scmp.eq.s32.totalorder %s31, 1
      %p206 = scmp.ne.s32.totalorder %s201, %s203
      %p207 = scmp.eq.s32.totalorder %s31, 0
      %p208 = por %p206, %p207
      %p209 = scmp.ne.s32.totalorder %s201, %s203
      %p210 = scmp.eq.s32.totalorder %s36, 1
      %p211 = por %p209, %p210
      %p212 = scmp.ne.s32.totalorder %s203, %s204
      %p213 = scmp.eq.s32.totalorder %s36, 0
      %p214 = por %p212, %p213
      %p215 = scmp.ne.s32.totalorder %s203, %s204
      %p216 = scmp.eq.s32.totalorder %s37, 1
      %p217 = por %p215, %p216
      %p219 = scmp.ne.s32.totalorder %s204, %s218
      %p220 = scmp.eq.s32.totalorder %s37, 0
      %p221 = por %p219, %p220
      %s222 = ssub.s32 %s31, %s38
      %p223 = scmp.eq.s32.totalorder %s222, 0
      %s225 = sadd.s32 %s224, 1
      %s226 = scalar_select %p223, %s224, %s225
      %p229 = pneg %p223
      %p230 = scmp.eq.s32.totalorder %s31, 1
      %p231 = por %p229, %p230
      %p232 = scmp.ne.s32.totalorder %s224, %s227
      %p233 = scmp.eq.s32.totalorder %s31, 0
      %p234 = por %p232, %p233
      %p235 = scmp.ne.s32.totalorder %s224, %s227
      %p236 = scmp.eq.s32.totalorder %s36, 1
      %p237 = por %p235, %p236
      %p238 = scmp.ne.s32.totalorder %s227, %s228
      %p239 = scmp.eq.s32.totalorder %s36, 0
      %p240 = por %p238, %p239
      %p241 = scmp.ne.s32.totalorder %s227, %s228
      %p242 = scmp.eq.s32.totalorder %s37, 1
      %p243 = por %p241, %p242
      %p245 = scmp.ne.s32.totalorder %s228, %s244
      %p246 = scmp.eq.s32.totalorder %s37, 0
      %p247 = por %p245, %p246
      %s248 = ssub.s32 %s31, %s38
      %p249 = scmp.eq.s32.totalorder %s248, 0
      %s251 = sadd.s32 %s250, 1
      %s252 = scalar_select %p249, %s250, %s251
      %p255 = pneg %p249
      %p256 = scmp.eq.s32.totalorder %s31, 1
      %p257 = por %p255, %p256
      %p258 = scmp.ne.s32.totalorder %s250, %s253
      %p259 = scmp.eq.s32.totalorder %s31, 0
      %p260 = por %p258, %p259
      %p261 = scmp.ne.s32.totalorder %s250, %s253
      %p262 = scmp.eq.s32.totalorder %s36, 1
      %p263 = por %p261, %p262
      %p264 = scmp.ne.s32.totalorder %s253, %s254
      %p265 = scmp.eq.s32.totalorder %s36, 0
      %p266 = por %p264, %p265
      %p267 = scmp.ne.s32.totalorder %s253, %s254
      %p268 = scmp.eq.s32.totalorder %s37, 1
      %p269 = por %p267, %p268
      %p271 = scmp.ne.s32.totalorder %s254, %s270
      %p272 = scmp.eq.s32.totalorder %s37, 0
      %p273 = por %p271, %p272
      %p274 = scmp.le.s32.totalorder 1, %s31
      %p275 = scmp.lt.s32.totalorder %s31, 3
      %p276 = pnand %p274, %p275
      %p277 = pneg %p276
      // Predicated region
      $region9: #{tpu_custom_call.1} parent=5 // pred_check
        _
      $region10: #{tpu_custom_call.1} parent=5 // pred_check_branch
        %279 = sbr.rel (%p276) target = $region12
      $region11: #{tpu_custom_call.1} parent=5 // pred_region
        %s280 = ssub.s32 %s31, 1
        // Predicated region
        $region13: #{tpu_custom_call.1} parent=11 // pred_check
          %p281 = pneg %p130
        $region14: #{tpu_custom_call.1} parent=11 // pred_check_branch
          %283 = sbr.rel (%p281) target = $region16
        $region15: #{tpu_custom_call.1} parent=11 // pred_region
          %285 = vsyncadd [#allocation10], 0
          %s287 = sshll.u32 %s3, 4
          %s288 = int_to_ptr.hbm [resolvable:$true] %s287
          %s289 = sshll.u32 [#allocation9], 4
          %s290 = int_to_ptr.vmem [resolvable:$true] %s289
          %292 = dma.hbm_to_vmem [thread:$0]  %s288, 128, %s290, [#allocation10]
        $region16: #{tpu_custom_call.1} parent=11 // pred_fallthru
          _
        // Predicated region
        $region17: #{tpu_custom_call.1} parent=11 // pred_check
          %p293 = pneg %p151
        $region18: #{tpu_custom_call.1} parent=11 // pred_check_branch
          %295 = sbr.rel (%p293) target = $region20
        $region19: #{tpu_custom_call.1} parent=11 // pred_region
          %297 = vsyncadd [#allocation10], 0
          %s299 = sshll.u32 %s4, 4
          %s300 = int_to_ptr.hbm [resolvable:$true] %s299
          %s301 = sshll.u32 [#allocation11], 4
          %s302 = int_to_ptr.vmem [resolvable:$true] %s301
          %304 = dma.hbm_to_vmem [thread:$0]  %s300, 128, %s302, [#allocation10]
        $region20: #{tpu_custom_call.1} parent=11 // pred_fallthru
          _
        // Predicated region
        $region21: #{tpu_custom_call.1} parent=11 // pred_check
          %p305 = pneg %p172
        $region22: #{tpu_custom_call.1} parent=11 // pred_check_branch
          %307 = sbr.rel (%p305) target = $region24
        $region23: #{tpu_custom_call.1} parent=11 // pred_region
          %309 = vsyncadd [#allocation13], 0
          %s310 = sshll.u32 %s5, 4
          %s311 = int_to_ptr.hbm [resolvable:$true] %s310
          %s312 = sshll.u32 [#allocation12], 4
          %s313 = int_to_ptr.vmem [resolvable:$true] %s312
          %318 = dma.hbm_to_vmem [thread:$0]  %s311, 768, %s313, [#allocation13], 64, 64, 4
        $region24: #{tpu_custom_call.1} parent=11 // pred_fallthru
          _
        // Predicated region
        $region25: #{tpu_custom_call.1} parent=11 // pred_check
          %p319 = pneg %p193
        $region26: #{tpu_custom_call.1} parent=11 // pred_check_branch
          %321 = sbr.rel (%p319) target = $region28
        $region27: #{tpu_custom_call.1} parent=11 // pred_region
          %323 = vsyncadd [#allocation13], 0
          %s324 = sshll.u32 %s6, 4
          %s325 = int_to_ptr.hbm [resolvable:$true] %s324
          %s326 = sshll.u32 [#allocation14], 4
          %s327 = int_to_ptr.vmem [resolvable:$true] %s326
          %332 = dma.hbm_to_vmem [thread:$0]  %s325, 256, %s327, [#allocation13], 64, 64, 4
        $region28: #{tpu_custom_call.1} parent=11 // pred_fallthru
          _
        // Predicated region
        $region29: #{tpu_custom_call.1} parent=11 // pred_check
          %p333 = pneg %p214
        $region30: #{tpu_custom_call.1} parent=11 // pred_check_branch
          %335 = sbr.rel (%p333) target = $region32
        $region31: #{tpu_custom_call.1} parent=11 // pred_region
          %337 = vsyncadd [#allocation16], 0
          %s338 = sshll.u32 %s7, 4
          %s339 = int_to_ptr.hbm [resolvable:$true] %s338
          %s340 = sshll.u32 [#allocation15], 4
          %s341 = int_to_ptr.vmem [resolvable:$true] %s340
          %346 = dma.hbm_to_vmem [thread:$0]  %s339, 256, %s341, [#allocation16], 64, 64, 4
        $region32: #{tpu_custom_call.1} parent=11 // pred_fallthru
          _
      $region12: #{tpu_custom_call.1} parent=5 // pred_fallthru
        _
      %p347 = scmp.lt.s32.totalorder %s31, 2
      // Predicated region
      $region33: #{tpu_custom_call.1} parent=5 // pred_check
        %p348 = pneg %p347
      $region34: #{tpu_custom_call.1} parent=5 // pred_check_branch
        %350 = sbr.rel (%p348) target = $region36
      $region35: #{tpu_custom_call.1} parent=5 // pred_region
        // Predicated region
        $region37: #{tpu_custom_call.1} parent=35 // pred_check
          %p351 = pneg %p51
        $region38: #{tpu_custom_call.1} parent=35 // pred_check_branch
          %353 = sbr.rel (%p351) target = $region40
        $region39: #{tpu_custom_call.1} parent=35 // pred_region
          %s354 = sand.u32 %s41, 1
          %s355 = scalar_lea.sflag [#allocation4], %s354
          %s356 = sand.u32 %s41, 1
          %s357 = smul.addr %s356, 8
          %s358 = scalar_lea.vmem [#allocation3], %s357
          %360 = vsyncadd %s355, 0
          %s361 = smul.addr %s31, 8
          %s362 = scalar_lea.hbm %s0, %s361
          %s364 = sshll.u32 %s362, 4
          %s365 = int_to_ptr.hbm [resolvable:$true] %s364
          %s366 = sshll.u32 %s358, 4
          %s367 = int_to_ptr.vmem [resolvable:$true] %s366
          %369 = dma.hbm_to_vmem [thread:$0]  %s365, 128, %s367, %s355
        $region40: #{tpu_custom_call.1} parent=35 // pred_fallthru
          _
        // Predicated region
        $region41: #{tpu_custom_call.1} parent=35 // pred_check
          %p370 = pneg %p77
        $region42: #{tpu_custom_call.1} parent=35 // pred_check_branch
          %372 = sbr.rel (%p370) target = $region44
        $region43: #{tpu_custom_call.1} parent=35 // pred_region
          %s373 = sand.u32 %s31, 1
          %s374 = scalar_lea.sflag [#allocation7], %s373
          %s375 = sand.u32 %s67, 1
          %s376 = smul.addr %s375, 8
          %s377 = scalar_lea.vmem [#allocation6], %s376
          %379 = vsyncadd %s374, 0
          %s380 = smul.addr %s31, 8
          %s381 = scalar_lea.hbm %s1, %s380
          %s383 = sshll.u32 %s381, 4
          %s384 = int_to_ptr.hbm [resolvable:$true] %s383
          %s385 = sshll.u32 %s377, 4
          %s386 = int_to_ptr.vmem [resolvable:$true] %s385
          %388 = dma.hbm_to_vmem [thread:$0]  %s384, 128, %s386, %s374
        $region44: #{tpu_custom_call.1} parent=35 // pred_fallthru
          _
        // Predicated region
        $region45: #{tpu_custom_call.1} parent=35 // pred_check
          %p389 = pneg %p103
        $region46: #{tpu_custom_call.1} parent=35 // pred_check_branch
          %391 = sbr.rel (%p389) target = $region48
        $region47: #{tpu_custom_call.1} parent=35 // pred_region
          %s392 = sand.u32 %s31, 1
          %s393 = scalar_lea.sflag [#allocation7], %s392
          %s394 = sand.u32 %s93, 1
          %s395 = smul.addr %s394, 8
          %s396 = scalar_lea.vmem [#allocation8], %s395
          %398 = vsyncadd %s393, 0
          %s399 = smul.addr %s31, 8
          %s400 = scalar_lea.hbm %s2, %s399
          %s402 = sshll.u32 %s400, 4
          %s403 = int_to_ptr.hbm [resolvable:$true] %s402
          %s404 = sshll.u32 %s396, 4
          %s405 = int_to_ptr.vmem [resolvable:$true] %s404
          %407 = dma.hbm_to_vmem [thread:$0]  %s403, 128, %s405, %s393
        $region48: #{tpu_custom_call.1} parent=35 // pred_fallthru
          _
      $region36: #{tpu_custom_call.1} parent=5 // pred_fallthru
        _
      %p408 = scmp.le.s32.totalorder 1, %s31
      %p409 = scmp.lt.s32.totalorder %s31, 3
      %p410 = pnand %p408, %p409
      %p411 = pneg %p410
      // Predicated region
      $region49: #{tpu_custom_call.1} parent=5 // pred_check
        _
      $region50: #{tpu_custom_call.1} parent=5 // pred_check_branch
        %413 = sbr.rel (%p410) target = $region52
      $region51: #{tpu_custom_call.1} parent=5 // pred_region
        %s414 = ssub.s32 %s31, 1
        %s415 = sand.u32 %s44, 1
        %s416 = scalar_lea.sflag [#allocation4], %s415
        %s417 = sand.u32 %s44, 1
        %s418 = smul.addr %s417, 8
        %s419 = scalar_lea.vmem [#allocation3], %s418
        // Predicated region
        $region53: #{tpu_custom_call.1} parent=51 // pred_check
          %p420 = pneg %p57
        $region54: #{tpu_custom_call.1} parent=51 // pred_check_branch
          %422 = sbr.rel (%p420) target = $region56
        $region55: #{tpu_custom_call.1} parent=51 // pred_region
          %424 = dma.done %s416, 128
        $region56: #{tpu_custom_call.1} parent=51 // pred_fallthru
          _
        %s425 = sand.u32 %s36, 1
        %s426 = scalar_lea.sflag [#allocation7], %s425
        %s427 = sand.u32 %s70, 1
        %s428 = smul.addr %s427, 8
        %s429 = scalar_lea.vmem [#allocation6], %s428
        // Predicated region
        $region57: #{tpu_custom_call.1} parent=51 // pred_check
          %p430 = pneg %p83
        $region58: #{tpu_custom_call.1} parent=51 // pred_check_branch
          %432 = sbr.rel (%p430) target = $region60
        $region59: #{tpu_custom_call.1} parent=51 // pred_region
          %434 = dma.done %s426, 128
        $region60: #{tpu_custom_call.1} parent=51 // pred_fallthru
          _
        %s435 = sand.u32 %s36, 1
        %s436 = scalar_lea.sflag [#allocation7], %s435
        %s437 = sand.u32 %s96, 1
        %s438 = smul.addr %s437, 8
        %s439 = scalar_lea.vmem [#allocation8], %s438
        // Predicated region
        $region61: #{tpu_custom_call.1} parent=51 // pred_check
          %p440 = pneg %p109
        $region62: #{tpu_custom_call.1} parent=51 // pred_check_branch
          %442 = sbr.rel (%p440) target = $region64
        $region63: #{tpu_custom_call.1} parent=51 // pred_region
          %444 = dma.done %s436, 128
        $region64: #{tpu_custom_call.1} parent=51 // pred_fallthru
          _
        // Predicated region
        $region65: #{tpu_custom_call.1} parent=51 // pred_check
          %p445 = pneg %p130
        $region66: #{tpu_custom_call.1} parent=51 // pred_check_branch
          %447 = sbr.rel (%p445) target = $region68
        $region67: #{tpu_custom_call.1} parent=51 // pred_region
          %449 = dma.done [#allocation10], 128
        $region68: #{tpu_custom_call.1} parent=51 // pred_fallthru
          _
        // Predicated region
        $region69: #{tpu_custom_call.1} parent=51 // pred_check
          %p450 = pneg %p151
        $region70: #{tpu_custom_call.1} parent=51 // pred_check_branch
          %452 = sbr.rel (%p450) target = $region72
        $region71: #{tpu_custom_call.1} parent=51 // pred_region
          %454 = dma.done [#allocation10], 128
        $region72: #{tpu_custom_call.1} parent=51 // pred_fallthru
          _
        // Predicated region
        $region73: #{tpu_custom_call.1} parent=51 // pred_check
          %p455 = pneg %p172
        $region74: #{tpu_custom_call.1} parent=51 // pred_check_branch
          %457 = sbr.rel (%p455) target = $region76
        $region75: #{tpu_custom_call.1} parent=51 // pred_region
          %459 = dma.done [#allocation13], 768
        $region76: #{tpu_custom_call.1} parent=51 // pred_fallthru
          _
        // Predicated region
        $region77: #{tpu_custom_call.1} parent=51 // pred_check
          %p460 = pneg %p193
        $region78: #{tpu_custom_call.1} parent=51 // pred_check_branch
          %462 = sbr.rel (%p460) target = $region80
        $region79: #{tpu_custom_call.1} parent=51 // pred_region
          %464 = dma.done [#allocation13], 256
        $region80: #{tpu_custom_call.1} parent=51 // pred_fallthru
          _
        // Predicated region
        $region81: #{tpu_custom_call.1} parent=51 // pred_check
          %p465 = pneg %p214
        $region82: #{tpu_custom_call.1} parent=51 // pred_check_branch
          %467 = sbr.rel (%p465) target = $region84
        $region83: #{tpu_custom_call.1} parent=51 // pred_region
          %469 = dma.done [#allocation16], 256
        $region84: #{tpu_custom_call.1} parent=51 // pred_fallthru
          _
        %s470 = sand.u32 %s44, 1
        %s471 = scalar_lea.sflag [#allocation4], %s470
        %s472 = sand.u32 %s44, 1
        %s473 = smul.addr %s472, 8
        %s474 = scalar_lea.vmem [#allocation3], %s473
        %p475 = pneg %p57
        %p476 = pneg %p54
        %s477 = sand.u32 %s36, 1
        %s478 = scalar_lea.sflag [#allocation7], %s477
        %s479 = sand.u32 %s70, 1
        %s480 = smul.addr %s479, 8
        %s481 = scalar_lea.vmem [#allocation6], %s480
        %p482 = pneg %p83
        %p483 = pneg %p80
        %s484 = sand.u32 %s36, 1
        %s485 = scalar_lea.sflag [#allocation7], %s484
        %s486 = sand.u32 %s96, 1
        %s487 = smul.addr %s486, 8
        %s488 = scalar_lea.vmem [#allocation8], %s487
        %p489 = pneg %p109
        %p490 = pneg %p106
        %p491 = pneg %p130
        %p492 = pneg %p127
        %p493 = pneg %p151
        %p494 = pneg %p148
        %p495 = pneg %p172
        %p496 = pneg %p169
        %p497 = pneg %p193
        %p498 = pneg %p190
        %p499 = pneg %p214
        %p500 = pneg %p211
        %p501 = pneg %p240
        %p502 = pneg %p237
        %s503 = sand.u32 %s227, 1
        %s504 = scalar_lea.sflag [#allocation5], %s503
        %s505 = sand.u32 %s227, 1
        %s506 = smul.addr %s505, 8
        %s507 = scalar_lea.vmem [#allocation17], %s506
        %p508 = pneg %p266
        %p509 = pneg %p263
        %s510 = sand.u32 %s253, 1
        %s511 = scalar_lea.sflag [#allocation19], %s510
        %s512 = sand.u32 %s253, 1
        %s513 = smul.addr %s512, 8
        %s514 = scalar_lea.vmem [#allocation18], %s513
        %v516 = vld [vmem:[#allocation9] sm:$0xff]
        %v517 = vld [vmem:[#allocation11] sm:$0x1f]
        %v518 = vld [vmem:[%s419] sm:$0xff]
        %vm519 = vcmask 261120
        %v520 = vsel %vm519, %v518, 0.0
        %521 = vadd.xlane.f32.xlu0 %v520
        %v522 = vpop.xlane.xlu0 %521
        %v523 = vrcp.pop 32.0
        %v524 = vmul.f32 32.0, %v523
        %v525 = vsub.f32 1.0, %v524
        %v526 = vmul.f32 %v523, %v525
        %v527 = vadd.f32 %v523, %v526
        %vm528 = vweird.f32 %v523
        %v529 = vsel %vm528, %v523, %v527
        %v530 = vmul.f32 %v522, %v529
        %v531 = vsub.f32 %v518, %v530
        %v532 = vmul.f32 %v531, %v531
        %v533 = vsel %vm519, %v532, 0.0
        %534 = vadd.xlane.f32.xlu0 %v533
        %v535 = vpop.xlane.xlu0 %534
        %v536 = vmul.f32 %v535, %v529
        %v537 = vadd.f32 %v536, 1e-05
        %v538 = vrsqrt.pop %v537
        %v539 = vmul.f32 %v538, %v537
        %v540 = vmul.f32 %v539, %v538
        %v541 = vmul.f32 0.5, %v540
        %v542 = vsub.f32 1.5, %v541
        %v543 = vmul.f32 %v538, %v542
        %vm544 = vweird.f32 %v537
        %vm545 = vweird.f32 %v538
        %vm546 = vmor %vm544, %vm545
        %v547 = vsel %vm546, %v538, %v543
        %v548 = vmul.f32 %v531, %v547
        %v549 = vperm.slane %v516, 0
        %v550 = vmul.f32 %v548, %v549
        %v551 = vperm.slane %v516, 1
        %v552 = vadd.f32 %v550, %v551
        %v553 = vld [vmem:[%s429] sm:$0xff]
        %v554 = vsel %vm519, %v553, 0.0
        %555 = vadd.xlane.f32.xlu0 %v554
        %v556 = vpop.xlane.xlu0 %555
        %v557 = vmul.f32 %v556, %v529
        %v558 = vsub.f32 %v553, %v557
        %v559 = vmul.f32 %v558, %v558
        %v560 = vsel %vm519, %v559, 0.0
        %561 = vadd.xlane.f32.xlu0 %v560
        %v562 = vpop.xlane.xlu0 %561
        %v563 = vmul.f32 %v562, %v529
        %v564 = vadd.f32 %v563, 1e-05
        %v565 = vrsqrt.pop %v564
        %v566 = vmul.f32 %v565, %v564
        %v567 = vmul.f32 %v566, %v565
        %v568 = vmul.f32 0.5, %v567
        %v569 = vsub.f32 1.5, %v568
        %v570 = vmul.f32 %v565, %v569
        %vm571 = vweird.f32 %v564
        %vm572 = vweird.f32 %v565
        %vm573 = vmor %vm571, %vm572
        %v574 = vsel %vm573, %v565, %v570
        %v575 = vmul.f32 %v558, %v574
        %v576 = vperm.slane %v516, 2
        %v577 = vmul.f32 %v575, %v576
        %v578 = vperm.slane %v516, 3
        %v579 = vadd.f32 %v577, %v578
        %v580 = vld [vmem:[%s439] sm:$0xff]
        %v581 = vsel %vm519, %v580, 0.0
        %582 = vadd.xlane.f32.xlu0 %v581
        %v583 = vpop.xlane.xlu0 %582
        %v584 = vmul.f32 %v583, %v529
        %v585 = vsub.f32 %v580, %v584
        %v586 = vmul.f32 %v585, %v585
        %v587 = vsel %vm519, %v586, 0.0
        %588 = vadd.xlane.f32.xlu0 %v587
        %v589 = vpop.xlane.xlu0 %588
        %v590 = vmul.f32 %v589, %v529
        %v591 = vadd.f32 %v590, 1e-05
        %v592 = vrsqrt.pop %v591
        %v593 = vmul.f32 %v592, %v591
        %v594 = vmul.f32 %v593, %v592
        %v595 = vmul.f32 0.5, %v594
        %v596 = vsub.f32 1.5, %v595
        %v597 = vmul.f32 %v592, %v596
        %vm598 = vweird.f32 %v591
        %vm599 = vweird.f32 %v592
        %vm600 = vmor %vm598, %vm599
        %v601 = vsel %vm600, %v592, %v597
        %v602 = vmul.f32 %v585, %v601
        %v603 = vperm.slane %v516, 4
        %v604 = vmul.f32 %v602, %v603
        %v605 = vperm.slane %v516, 5
        %v606 = vadd.f32 %v604, %v605
        %v607 = vpack.c.bf16 %v552, %v552
        %v608 = vld [vmem:[#allocation12] sm:$0xf]
        %v609 = vld [vmem:[#allocation12 + $0x4] sm:$0xf]
        %v610 = vld [vmem:[#allocation12 + $0x8] sm:$0xf]
        %v611 = vld [vmem:[#allocation12 + $0xc] sm:$0xf]
        %v612 = vperm.slane %v517, 0
        %v617 = vunpack.c.l.b16 %v608
        %v618 = vunpack.c.l.b16 %v609
        %v619 = vunpack.c.l.b16 %v610
        %v620 = vunpack.c.l.b16 %v611
        %v621 = vpack.c.b16 %v618, %v617
        %v622 = vpack.c.b16 %v620, %v619
        %v626 = vsel %vm519, %v607, 0
        %628 = vmatpush.bf16.msra.mxu0 0
        %629 = vmatpush.bf16.msra.mxu0 0
        %630 = vmatpush.bf16.msra.mxu0 0
        %631 = vmatpush.bf16.msra.mxu0 0
        %632 = vmatpush.bf16.msra.mxu0 0
        %633 = vmatpush.bf16.msra.mxu0 0
        %634 = vmatpush.bf16.msra.mxu0 %v622
        %635 = vmatpush.bf16.msra.mxu0 %v621
        %636 = vmatmul.bf16.gmra.mxu0 %v626
        %v637 = vpop.f32.mrf.mxu0
        %v638 = vadd.f32 %v612, %v637
        %v639 = vpop.f32.mrf.mxu0
        %640 = vdwg.mxu0
        %v641 = vpack.c.bf16 %v579, %v579
        %s642 = scalar_lea.vmem [#allocation12], 16
        %v643 = vld [vmem:[%s642] sm:$0xf]
        %v644 = vld [vmem:[%s642 + $0x4] sm:$0xf]
        %v645 = vld [vmem:[%s642 + $0x8] sm:$0xf]
        %v646 = vld [vmem:[%s642 + $0xc] sm:$0xf]
        %v647 = vperm.slane %v517, 1
        %v652 = vunpack.c.l.b16 %v643
        %v653 = vunpack.c.l.b16 %v644
        %v654 = vunpack.c.l.b16 %v645
        %v655 = vunpack.c.l.b16 %v646
        %v656 = vpack.c.b16 %v653, %v652
        %v657 = vpack.c.b16 %v655, %v654
        %v661 = vsel %vm519, %v641, 0
        %663 = vmatpush.bf16.msra.mxu0 0
        %664 = vmatpush.bf16.msra.mxu0 0
        %665 = vmatpush.bf16.msra.mxu0 0
        %666 = vmatpush.bf16.msra.mxu0 0
        %667 = vmatpush.bf16.msra.mxu0 0
        %668 = vmatpush.bf16.msra.mxu0 0
        %669 = vmatpush.bf16.msra.mxu0 %v657
        %670 = vmatpush.bf16.msra.mxu0 %v656
        %671 = vmatmul.bf16.gmra.mxu0 %v661
        %v672 = vpop.f32.mrf.mxu0
        %v673 = vadd.f32 %v647, %v672
        %v674 = vpop.f32.mrf.mxu0
        %675 = vdwg.mxu0
        %v676 = vpack.c.bf16 %v606, %v606
        %s677 = scalar_lea.vmem [#allocation12], 32
        %v678 = vld [vmem:[%s677] sm:$0xf]
        %v679 = vld [vmem:[%s677 + $0x4] sm:$0xf]
        %v680 = vld [vmem:[%s677 + $0x8] sm:$0xf]
        %v681 = vld [vmem:[%s677 + $0xc] sm:$0xf]
        %v682 = vperm.slane %v517, 2
        %v687 = vunpack.c.l.b16 %v678
        %v688 = vunpack.c.l.b16 %v679
        %v689 = vunpack.c.l.b16 %v680
        %v690 = vunpack.c.l.b16 %v681
        %v691 = vpack.c.b16 %v688, %v687
        %v692 = vpack.c.b16 %v690, %v689
        %v696 = vsel %vm519, %v676, 0
        %698 = vmatpush.bf16.msra.mxu0 0
        %699 = vmatpush.bf16.msra.mxu0 0
        %700 = vmatpush.bf16.msra.mxu0 0
        %701 = vmatpush.bf16.msra.mxu0 0
        %702 = vmatpush.bf16.msra.mxu0 0
        %703 = vmatpush.bf16.msra.mxu0 0
        %704 = vmatpush.bf16.msra.mxu0 %v692
        %705 = vmatpush.bf16.msra.mxu0 %v691
        %706 = vmatmul.bf16.gmra.mxu0 %v696
        %v707 = vpop.f32.mrf.mxu0
        %v708 = vadd.f32 %v682, %v707
        %v709 = vpop.f32.mrf.mxu0
        %710 = vdwg.mxu0
        %v711 = vpack.c.bf16 %v638, %v638
        %v712 = vpack.c.bf16 %v673, %v673
        %v713 = vpack.c.bf16 %v708, %v708
        %vm714 = vcmask 64512
        %v716 = vsel %vm714, %v711, 0
        %v719 = vsel %vm714, %v712, 0
        %721 = vmatpush.bf16.xpose.msra.mxu0 0
        %722 = vmatpush.bf16.xpose.msra.mxu0 0
        %723 = vmatpush.bf16.xpose.msra.mxu0 0
        %724 = vmatpush.bf16.xpose.msra.mxu0 0
        %725 = vmatpush.bf16.xpose.msra.mxu0 0
        %726 = vmatpush.bf16.xpose.msra.mxu0 0
        %727 = vmatpush.bf16.xpose.msra.mxu0 0
        %728 = vmatpush.bf16.xpose.msra.mxu0 %v719
        %729 = vmatmul.bf16.gmra.mxu0 %v716
        %v730 = vpop.f32.mrf.mxu0
        %v731 = vadd.f32 0.0, %v730
        %v732 = vpop.f32.mrf.mxu0
        %733 = vdwg.mxu0
        %v734 = vsel %vm714, %v731, -inf
        %735 = vmax.xlane.f32.xlu0 %v734
        %v736 = vpop.xlane.xlu0 %735
        %v737 = vsub.f32 %v731, %v736
        %v738 = vmul.f32 %v737, 1.442695
        %v739 = vpow.pop %v738
        %v740 = vsel %vm714, %v739, 0.0
        %741 = vadd.xlane.f32.xlu0 %v740
        %v742 = vpop.xlane.xlu0 %741
        %v743 = vrcp.pop %v742
        %v744 = vmul.f32 %v742, %v743
        %v745 = vsub.f32 1.0, %v744
        %v746 = vmul.f32 %v743, %v745
        %v747 = vadd.f32 %v743, %v746
        %vm748 = vweird.f32 %v742
        %vm749 = vweird.f32 %v743
        %vm750 = vmor %vm748, %vm749
        %v751 = vsel %vm750, %v743, %v747
        %v752 = vand.u32 2147483647, %v742
        %vm753 = vcmp.eq.f32.partialorder %v752, 8.507059e+37
        %v754 = vand.u32 %v742, 2147483648
        %v755 = vor.u32 1.1754944e-38, %v754
        %v756 = vsel %vm753, %v755, %v751
        %v757 = vmul.f32 %v739, %v756
        %v758 = vadd.f32 %v757, 0.0
        %v759 = vpack.c.bf16 %v757, %v757
        %v761 = vsel %vm714, %v759, 0
        %vm763 = vcmask 1043456
        %v765 = vsel %vm763, %v713, 0
        %767 = vmatpush.bf16.msra.mxu0 0
        %768 = vmatpush.bf16.msra.mxu0 0
        %769 = vmatpush.bf16.msra.mxu0 0
        %770 = vmatpush.bf16.msra.mxu0 0
        %771 = vmatpush.bf16.msra.mxu0 0
        %772 = vmatpush.bf16.msra.mxu0 0
        %773 = vmatpush.bf16.msra.mxu0 0
        %774 = vmatpush.bf16.msra.mxu0 %v765
        %775 = vmatmul.bf16.gmra.mxu0 %v761
        %v776 = vpop.f32.mrf.mxu0
        %v777 = vadd.f32 0.0, %v776
        %v778 = vpop.f32.mrf.mxu0
        %779 = vdwg.mxu0
        %780 = vst.msk [vmem:[#allocation2] sm:$0xff] %vm714, %v777
        %v782 = vunpack.c.l.b16 %v711
        %v783 = vpack.c.b16 %v782, %v782
        %784 = vrot.lane.b32.xlu0 %v783, 120
        %v785 = vpop.permute.xlu0 %784
        %v787 = vunpack.c.l.b16 %v712
        %v788 = vpack.c.b16 %v787, %v787
        %789 = vrot.lane.b32.xlu0 %v788, 120
        %v790 = vpop.permute.xlu0 %789
        %v792 = vsel %vm714, %v785, 0
        %v795 = vsel %vm714, %v790, 0
        %797 = vmatpush.bf16.xpose.msra.mxu0 0
        %798 = vmatpush.bf16.xpose.msra.mxu0 0
        %799 = vmatpush.bf16.xpose.msra.mxu0 0
        %800 = vmatpush.bf16.xpose.msra.mxu0 0
        %801 = vmatpush.bf16.xpose.msra.mxu0 0
        %802 = vmatpush.bf16.xpose.msra.mxu0 0
        %803 = vmatpush.bf16.xpose.msra.mxu0 0
        %804 = vmatpush.bf16.xpose.msra.mxu0 %v795
        %805 = vmatmul.bf16.gmra.mxu0 %v792
        %v806 = vpop.f32.mrf.mxu0
        %v807 = vadd.f32 0.0, %v806
        %v808 = vpop.f32.mrf.mxu0
        %809 = vdwg.mxu0
        %v810 = vsel %vm714, %v807, -inf
        %811 = vmax.xlane.f32.xlu0 %v810
        %v812 = vpop.xlane.xlu0 %811
        %v813 = vsub.f32 %v807, %v812
        %v814 = vmul.f32 %v813, 1.442695
        %v815 = vpow.pop %v814
        %v816 = vsel %vm714, %v815, 0.0
        %817 = vadd.xlane.f32.xlu0 %v816
        %v818 = vpop.xlane.xlu0 %817
        %v819 = vrcp.pop %v818
        %v820 = vmul.f32 %v818, %v819
        %v821 = vsub.f32 1.0, %v820
        %v822 = vmul.f32 %v819, %v821
        %v823 = vadd.f32 %v819, %v822
        %vm824 = vweird.f32 %v818
        %vm825 = vweird.f32 %v819
        %vm826 = vmor %vm824, %vm825
        %v827 = vsel %vm826, %v819, %v823
        %v828 = vand.u32 2147483647, %v818
        %vm829 = vcmp.eq.f32.partialorder %v828, 8.507059e+37
        %v830 = vand.u32 %v818, 2147483648
        %v831 = vor.u32 1.1754944e-38, %v830
        %v832 = vsel %vm829, %v831, %v827
        %v833 = vmul.f32 %v815, %v832
        %v834 = vadd.f32 %v758, %v833
        %v835 = vpack.c.bf16 %v833, %v833
        %v837 = vunpack.c.l.b16 %v713
        %v838 = vpack.c.b16 %v837, %v837
        %839 = vrot.lane.b32.xlu0 %v838, 120
        %v840 = vpop.permute.xlu0 %839
        %v842 = vsel %vm714, %v835, 0
        %v845 = vsel %vm763, %v840, 0
        %847 = vmatpush.bf16.msra.mxu0 0
        %848 = vmatpush.bf16.msra.mxu0 0
        %849 = vmatpush.bf16.msra.mxu0 0
        %850 = vmatpush.bf16.msra.mxu0 0
        %851 = vmatpush.bf16.msra.mxu0 0
        %852 = vmatpush.bf16.msra.mxu0 0
        %853 = vmatpush.bf16.msra.mxu0 0
        %854 = vmatpush.bf16.msra.mxu0 %v845
        %855 = vmatmul.bf16.gmra.mxu0 %v842
        %v856 = vpop.f32.mrf.mxu0
        %v857 = vadd.f32 0.0, %v856
        %v858 = vpop.f32.mrf.mxu0
        %859 = vdwg.mxu0
        %861 = vrot.lane.b32.xlu0 %v857, 8
        %v862 = vpop.permute.xlu0 %861
        %vm864 = vcmask 130112
        %865 = vst.msk [vmem:[#allocation2] sm:$0xff] %vm864, %v862
        %866 = vrot.lane.b32.xlu0 %v783, 112
        %v867 = vpop.permute.xlu0 %866
        %868 = vrot.lane.b32.xlu0 %v788, 112
        %v869 = vpop.permute.xlu0 %868
        %v871 = vsel %vm714, %v867, 0
        %v874 = vsel %vm714, %v869, 0
        %876 = vmatpush.bf16.xpose.msra.mxu0 0
        %877 = vmatpush.bf16.xpose.msra.mxu0 0
        %878 = vmatpush.bf16.xpose.msra.mxu0 0
        %879 = vmatpush.bf16.xpose.msra.mxu0 0
        %880 = vmatpush.bf16.xpose.msra.mxu0 0
        %881 = vmatpush.bf16.xpose.msra.mxu0 0
        %882 = vmatpush.bf16.xpose.msra.mxu0 0
        %883 = vmatpush.bf16.xpose.msra.mxu0 %v874
        %884 = vmatmul.bf16.gmra.mxu0 %v871
        %v885 = vpop.f32.mrf.mxu0
        %v886 = vadd.f32 0.0, %v885
        %v887 = vpop.f32.mrf.mxu0
        %888 = vdwg.mxu0
        %v889 = vsel %vm714, %v886, -inf
        %890 = vmax.xlane.f32.xlu0 %v889
        %v891 = vpop.xlane.xlu0 %890
        %v892 = vsub.f32 %v886, %v891
        %v893 = vmul.f32 %v892, 1.442695
        %v894 = vpow.pop %v893
        %v895 = vsel %vm714, %v894, 0.0
        %896 = vadd.xlane.f32.xlu0 %v895
        %v897 = vpop.xlane.xlu0 %896
        %v898 = vrcp.pop %v897
        %v899 = vmul.f32 %v897, %v898
        %v900 = vsub.f32 1.0, %v899
        %v901 = vmul.f32 %v898, %v900
        %v902 = vadd.f32 %v898, %v901
        %vm903 = vweird.f32 %v897
        %vm904 = vweird.f32 %v898
        %vm905 = vmor %vm903, %vm904
        %v906 = vsel %vm905, %v898, %v902
        %v907 = vand.u32 2147483647, %v897
        %vm908 = vcmp.eq.f32.partialorder %v907, 8.507059e+37
        %v909 = vand.u32 %v897, 2147483648
        %v910 = vor.u32 1.1754944e-38, %v909
        %v911 = vsel %vm908, %v910, %v906
        %v912 = vmul.f32 %v894, %v911
        %v913 = vadd.f32 %v834, %v912
        %v914 = vpack.c.bf16 %v912, %v912
        %915 = vrot.lane.b32.xlu0 %v838, 112
        %v916 = vpop.permute.xlu0 %915
        %v918 = vsel %vm714, %v914, 0
        %v921 = vsel %vm763, %v916, 0
        %923 = vmatpush.bf16.msra.mxu0 0
        %924 = vmatpush.bf16.msra.mxu0 0
        %925 = vmatpush.bf16.msra.mxu0 0
        %926 = vmatpush.bf16.msra.mxu0 0
        %927 = vmatpush.bf16.msra.mxu0 0
        %928 = vmatpush.bf16.msra.mxu0 0
        %929 = vmatpush.bf16.msra.mxu0 0
        %930 = vmatpush.bf16.msra.mxu0 %v921
        %931 = vmatmul.bf16.gmra.mxu0 %v918
        %v932 = vpop.f32.mrf.mxu0
        %v933 = vadd.f32 0.0, %v932
        %v934 = vpop.f32.mrf.mxu0
        %935 = vdwg.mxu0
        %937 = vrot.lane.b32.xlu0 %v933, 16
        %v938 = vpop.permute.xlu0 %937
        %vm940 = vcmask 195712
        %941 = vst.msk [vmem:[#allocation2] sm:$0xff] %vm940, %v938
        %942 = vrot.lane.b32.xlu0 %v783, 104
        %v943 = vpop.permute.xlu0 %942
        %944 = vrot.lane.b32.xlu0 %v788, 104
        %v945 = vpop.permute.xlu0 %944
        %v947 = vsel %vm714, %v943, 0
        %v950 = vsel %vm714, %v945, 0
        %952 = vmatpush.bf16.xpose.msra.mxu0 0
        %953 = vmatpush.bf16.xpose.msra.mxu0 0
        %954 = vmatpush.bf16.xpose.msra.mxu0 0
        %955 = vmatpush.bf16.xpose.msra.mxu0 0
        %956 = vmatpush.bf16.xpose.msra.mxu0 0
        %957 = vmatpush.bf16.xpose.msra.mxu0 0
        %958 = vmatpush.bf16.xpose.msra.mxu0 0
        %959 = vmatpush.bf16.xpose.msra.mxu0 %v950
        %960 = vmatmul.bf16.gmra.mxu0 %v947
        %v961 = vpop.f32.mrf.mxu0
        %v962 = vadd.f32 0.0, %v961
        %v963 = vpop.f32.mrf.mxu0
        %964 = vdwg.mxu0
        %v965 = vsel %vm714, %v962, -inf
        %966 = vmax.xlane.f32.xlu0 %v965
        %v967 = vpop.xlane.xlu0 %966
        %v968 = vsub.f32 %v962, %v967
        %v969 = vmul.f32 %v968, 1.442695
        %v970 = vpow.pop %v969
        %v971 = vsel %vm714, %v970, 0.0
        %972 = vadd.xlane.f32.xlu0 %v971
        %v973 = vpop.xlane.xlu0 %972
        %v974 = vrcp.pop %v973
        %v975 = vmul.f32 %v973, %v974
        %v976 = vsub.f32 1.0, %v975
        %v977 = vmul.f32 %v974, %v976
        %v978 = vadd.f32 %v974, %v977
        %vm979 = vweird.f32 %v973
        %vm980 = vweird.f32 %v974
        %vm981 = vmor %vm979, %vm980
        %v982 = vsel %vm981, %v974, %v978
        %v983 = vand.u32 2147483647, %v973
        %vm984 = vcmp.eq.f32.partialorder %v983, 8.507059e+37
        %v985 = vand.u32 %v973, 2147483648
        %v986 = vor.u32 1.1754944e-38, %v985
        %v987 = vsel %vm984, %v986, %v982
        %v988 = vmul.f32 %v970, %v987
        %v989 = vadd.f32 %v913, %v988
        %v990 = vpack.c.bf16 %v988, %v988
        %991 = vrot.lane.b32.xlu0 %v838, 104
        %v992 = vpop.permute.xlu0 %991
        %v994 = vsel %vm714, %v990, 0
        %v997 = vsel %vm763, %v992, 0
        %999 = vmatpush.bf16.msra.mxu0 0
        %1000 = vmatpush.bf16.msra.mxu0 0
        %1001 = vmatpush.bf16.msra.mxu0 0
        %1002 = vmatpush.bf16.msra.mxu0 0
        %1003 = vmatpush.bf16.msra.mxu0 0
        %1004 = vmatpush.bf16.msra.mxu0 0
        %1005 = vmatpush.bf16.msra.mxu0 0
        %1006 = vmatpush.bf16.msra.mxu0 %v997
        %1007 = vmatmul.bf16.gmra.mxu0 %v994
        %v1008 = vpop.f32.mrf.mxu0
        %v1009 = vadd.f32 0.0, %v1008
        %v1010 = vpop.f32.mrf.mxu0
        %1011 = vdwg.mxu0
        %1013 = vrot.lane.b32.xlu0 %v1009, 24
        %v1014 = vpop.permute.xlu0 %1013
        %vm1016 = vcmask 261312
        %1017 = vst.msk [vmem:[#allocation2] sm:$0xff] %vm1016, %v1014
        %v1018 = vmul.f32 %v989, 0.25
        %1019 = vst.msk [vmem:[%s514] sm:$0xff] %vm714, %v1018
        %v1020 = vld [vmem:[#allocation2] sm:$0xff]
        %v1021 = vpack.c.bf16 %v1020, %v1020
        %v1022 = vld [vmem:[#allocation14] sm:$0xf]
        %v1023 = vld [vmem:[#allocation14 + $0x4] sm:$0xf]
        %v1024 = vld [vmem:[#allocation14 + $0x8] sm:$0xf]
        %v1025 = vld [vmem:[#allocation14 + $0xc] sm:$0xf]
        %v1026 = vperm.slane %v517, 3
        %v1031 = vunpack.c.l.b16 %v1022
        %v1032 = vunpack.c.l.b16 %v1023
        %v1033 = vunpack.c.l.b16 %v1024
        %v1034 = vunpack.c.l.b16 %v1025
        %v1035 = vpack.c.b16 %v1032, %v1031
        %v1036 = vpack.c.b16 %v1034, %v1033
        %v1040 = vsel %vm519, %v1021, 0
        %1042 = vmatpush.bf16.msra.mxu0 0
        %1043 = vmatpush.bf16.msra.mxu0 0
        %1044 = vmatpush.bf16.msra.mxu0 0
        %1045 = vmatpush.bf16.msra.mxu0 0
        %1046 = vmatpush.bf16.msra.mxu0 0
        %1047 = vmatpush.bf16.msra.mxu0 0
        %1048 = vmatpush.bf16.msra.mxu0 %v1036
        %1049 = vmatpush.bf16.msra.mxu0 %v1035
        %1050 = vmatmul.bf16.gmra.mxu0 %v1040
        %v1051 = vpop.f32.mrf.mxu0
        %v1052 = vadd.f32 %v1026, %v1051
        %v1053 = vpop.f32.mrf.mxu0
        %1054 = vdwg.mxu0
        %v1055 = vsel %vm519, %v1052, 0.0
        %1056 = vadd.xlane.f32.xlu0 %v1055
        %v1057 = vpop.xlane.xlu0 %1056
        %v1058 = vmul.f32 %v1057, %v529
        %v1059 = vsub.f32 %v1052, %v1058
        %v1060 = vmul.f32 %v1059, %v1059
        %v1061 = vsel %vm519, %v1060, 0.0
        %1062 = vadd.xlane.f32.xlu0 %v1061
        %v1063 = vpop.xlane.xlu0 %1062
        %v1064 = vmul.f32 %v1063, %v529
        %v1065 = vadd.f32 %v1064, 1e-05
        %v1066 = vrsqrt.pop %v1065
        %v1067 = vmul.f32 %v1066, %v1065
        %v1068 = vmul.f32 %v1067, %v1066
        %v1069 = vmul.f32 0.5, %v1068
        %v1070 = vsub.f32 1.5, %v1069
        %v1071 = vmul.f32 %v1066, %v1070
        %vm1072 = vweird.f32 %v1065
        %vm1073 = vweird.f32 %v1066
        %vm1074 = vmor %vm1072, %vm1073
        %v1075 = vsel %vm1074, %v1066, %v1071
        %v1076 = vmul.f32 %v1059, %v1075
        %v1077 = vperm.slane %v516, 6
        %v1078 = vmul.f32 %v1076, %v1077
        %v1079 = vperm.slane %v516, 7
        %v1080 = vadd.f32 %v1078, %v1079
        %v1081 = vadd.f32 %v552, %v1080
        %v1082 = vpack.c.bf16 %v1081, %v1081
        %v1083 = vld [vmem:[#allocation15] sm:$0xf]
        %v1084 = vld [vmem:[#allocation15 + $0x4] sm:$0xf]
        %v1085 = vld [vmem:[#allocation15 + $0x8] sm:$0xf]
        %v1086 = vld [vmem:[#allocation15 + $0xc] sm:$0xf]
        %v1087 = vperm.slane %v517, 4
        %v1092 = vunpack.c.l.b16 %v1083
        %v1093 = vunpack.c.l.b16 %v1084
        %v1094 = vunpack.c.l.b16 %v1085
        %v1095 = vunpack.c.l.b16 %v1086
        %v1096 = vpack.c.b16 %v1093, %v1092
        %v1097 = vpack.c.b16 %v1095, %v1094
        %v1101 = vsel %vm519, %v1082, 0
        %1103 = vmatpush.bf16.msra.mxu0 0
        %1104 = vmatpush.bf16.msra.mxu0 0
        %1105 = vmatpush.bf16.msra.mxu0 0
        %1106 = vmatpush.bf16.msra.mxu0 0
        %1107 = vmatpush.bf16.msra.mxu0 0
        %1108 = vmatpush.bf16.msra.mxu0 0
        %1109 = vmatpush.bf16.msra.mxu0 %v1097
        %1110 = vmatpush.bf16.msra.mxu0 %v1096
        %1111 = vmatmul.bf16.gmra.mxu0 %v1101
        %v1112 = vpop.f32.mrf.mxu0
        %v1113 = vadd.f32 %v1087, %v1112
        %v1114 = vpop.f32.mrf.mxu0
        %1115 = vdwg.mxu0
        %v1116 = vmul.f32 %v1113, 0.5
        %v1117 = vmul.f32 %v1113, 0.70710677
        %v1118 = vmul.f32 %v1117, %v1117
        %v1119 = vmin.f32 16.0, %v1118
        %v1120 = vmul.f32 %v1119, 2.1237322e-06
        %v1121 = vadd.f32 %v1120, 0.00028619796
        %v1122 = vmul.f32 %v1119, %v1121
        %v1123 = vadd.f32 %v1122, 0.0036580483
        %v1124 = vmul.f32 %v1119, %v1123
        %v1125 = vadd.f32 %v1124, 0.05243302
        %v1126 = vmul.f32 %v1119, %v1125
        %v1127 = vadd.f32 %v1126, 0.18741608
        %v1128 = vmul.f32 %v1119, %v1127
        %v1129 = vadd.f32 %v1128, 1.1283791
        %v1130 = vmul.f32 %v1117, %v1129
        %v1131 = vmul.f32 %v1119, 3.8918573e-05
        %v1132 = vadd.f32 %v1131, 0.001143296
        %v1133 = vmul.f32 %v1119, %v1132
        %v1134 = vadd.f32 %v1133, 0.014752088
        %v1135 = vmul.f32 %v1119, %v1134
        %v1136 = vadd.f32 %v1135, 0.112945676
        %v1137 = vmul.f32 %v1119, %v1136
        %v1138 = vadd.f32 %v1137, 0.4994258
        %v1139 = vmul.f32 %v1119, %v1138
        %v1140 = vadd.f32 %v1139, 1.0
        %v1141 = vrcp.pop %v1140
        %v1142 = vmul.f32 %v1140, %v1141
        %v1143 = vsub.f32 1.0, %v1142
        %v1144 = vmul.f32 %v1141, %v1143
        %v1145 = vadd.f32 %v1141, %v1144
        %vm1146 = vweird.f32 %v1140
        %vm1147 = vweird.f32 %v1141
        %vm1148 = vmor %vm1146, %vm1147
        %v1149 = vsel %vm1148, %v1141, %v1145
        %v1150 = vand.u32 2147483647, %v1140
        %vm1151 = vcmp.eq.f32.partialorder %v1150, 8.507059e+37
        %v1152 = vand.u32 %v1140, 2147483648
        %v1153 = vor.u32 1.1754944e-38, %v1152
        %v1154 = vsel %vm1151, %v1153, %v1149
        %v1155 = vmul.f32 %v1130, %v1154
        %v1156 = vmin.f32 %v1155, 1.0
        %v1157 = vmax.f32 %v1156, -1.0
        %v1158 = vadd.f32 %v1157, 1.0
        %v1159 = vmul.f32 %v1116, %v1158
        %v1160 = vadd.f32 %v1081, %v1159
        %1161 = vst.msk [vmem:[%s507] sm:$0xff] %vm519, %v1160
        %s1162 = sand.u32 %s227, 1
        %s1163 = scalar_lea.sflag [#allocation5], %s1162
        %s1164 = sand.u32 %s227, 1
        %s1165 = smul.addr %s1164, 8
        %s1166 = scalar_lea.vmem [#allocation17], %s1165
        %s1167 = sand.u32 %s253, 1
        %s1168 = scalar_lea.sflag [#allocation19], %s1167
        %s1169 = sand.u32 %s253, 1
        %s1170 = smul.addr %s1169, 8
        %s1171 = scalar_lea.vmem [#allocation18], %s1170
        // Predicated region
        $region85: #{tpu_custom_call.1} parent=51 // pred_check
          %p1172 = pneg %p237
        $region86: #{tpu_custom_call.1} parent=51 // pred_check_branch
          %1174 = sbr.rel (%p1172) target = $region88
        $region87: #{tpu_custom_call.1} parent=51 // pred_region
          %1176 = vsyncadd %s1163, 0
          %s1177 = smul.addr %s36, 8
          %s1178 = scalar_lea.hbm %s8, %s1177
          %s1180 = sshll.u32 %s1166, 4
          %s1181 = int_to_ptr.vmem [resolvable:$true] %s1180
          %s1182 = sshll.u32 %s1178, 4
          %s1183 = int_to_ptr.hbm [resolvable:$true] %s1182
          %1185 = dma.vmem_to_hbm [thread:$0]  %s1181, 128, %s1183, %s1163
        $region88: #{tpu_custom_call.1} parent=51 // pred_fallthru
          _
        // Predicated region
        $region89: #{tpu_custom_call.1} parent=51 // pred_check
          %p1186 = pneg %p263
        $region90: #{tpu_custom_call.1} parent=51 // pred_check_branch
          %1188 = sbr.rel (%p1186) target = $region92
        $region91: #{tpu_custom_call.1} parent=51 // pred_region
          %1190 = vsyncadd %s1168, 0
          %s1191 = smul.addr %s36, 8
          %s1192 = scalar_lea.hbm %s9, %s1191
          %s1194 = sshll.u32 %s1171, 4
          %s1195 = int_to_ptr.vmem [resolvable:$true] %s1194
          %s1196 = sshll.u32 %s1192, 4
          %s1197 = int_to_ptr.hbm [resolvable:$true] %s1196
          %1199 = dma.vmem_to_hbm [thread:$0]  %s1195, 128, %s1197, %s1168
        $region92: #{tpu_custom_call.1} parent=51 // pred_fallthru
          _
      $region52: #{tpu_custom_call.1} parent=5 // pred_fallthru
        _
      %p1200 = scmp.le.s32.totalorder 2, %s31
      // Predicated region
      $region93: #{tpu_custom_call.1} parent=5 // pred_check
        %p1201 = pneg %p1200
      $region94: #{tpu_custom_call.1} parent=5 // pred_check_branch
        %1203 = sbr.rel (%p1201) target = $region96
      $region95: #{tpu_custom_call.1} parent=5 // pred_region
        %s1204 = ssub.s32 %s31, 2
        // Predicated region
        $region97: #{tpu_custom_call.1} parent=95 // pred_check
          %p1205 = pneg %p243
        $region98: #{tpu_custom_call.1} parent=95 // pred_check_branch
          %1207 = sbr.rel (%p1205) target = $region100
        $region99: #{tpu_custom_call.1} parent=95 // pred_region
          %s1208 = sand.u32 %s228, 1
          %s1209 = scalar_lea.sflag [#allocation5], %s1208
          %s1210 = sand.u32 %s228, 1
          %s1211 = smul.addr %s1210, 8
          %s1212 = scalar_lea.vmem [#allocation17], %s1211
          %1214 = dma.done %s1209, 128
        $region100: #{tpu_custom_call.1} parent=95 // pred_fallthru
          _
        // Predicated region
        $region101: #{tpu_custom_call.1} parent=95 // pred_check
          %p1215 = pneg %p269
        $region102: #{tpu_custom_call.1} parent=95 // pred_check_branch
          %1217 = sbr.rel (%p1215) target = $region104
        $region103: #{tpu_custom_call.1} parent=95 // pred_region
          %s1218 = sand.u32 %s254, 1
          %s1219 = scalar_lea.sflag [#allocation19], %s1218
          %s1220 = sand.u32 %s254, 1
          %s1221 = smul.addr %s1220, 8
          %s1222 = scalar_lea.vmem [#allocation18], %s1221
          %1224 = dma.done %s1219, 128
        $region104: #{tpu_custom_call.1} parent=95 // pred_fallthru
          _
      $region96: #{tpu_custom_call.1} parent=5 // pred_fallthru
        _
    $region6: #{tpu_custom_call.1} parent=1 // loop_footer
      %s35 = sadd.s32 1, %s31
    $region7: #{tpu_custom_call.1} parent=1 // loop_footer_branch
      %30 = sbr.rel target = $region3
    $region8: #{tpu_custom_call.1} parent=1 // loop_exit
      _
    %1225 = vsyncpa [#allocation4], 1
    %s1226 = scalar_lea.sflag [#allocation4], 1
    %1227 = vsyncpa %s1226, 1
    %1228 = vsyncpa [#allocation7], 1
    %s1229 = scalar_lea.sflag [#allocation7], 1
    %1230 = vsyncpa %s1229, 1
    %1231 = vsyncpa [#allocation10], 1
    %1232 = vsyncpa [#allocation13], 1
    %1233 = vsyncpa [#allocation16], 1
    %1234 = vsyncpa [#allocation5], 1
    %s1235 = scalar_lea.sflag [#allocation5], 1
    %1236 = vsyncpa %s1235, 1
    %1237 = vsyncpa [#allocation19], 1
    %s1238 = scalar_lea.sflag [#allocation19], 1
    %1239 = vsyncpa %s1238, 1

</llo_original>
